<compile_context>
chip_gen: v7x
topology: tpu7x:2x2x1
jax: 0.10.0
libtpu: 0.0.40
codegen_flags: <defaults>
</compile_context>

<pallas_src>
import jax
import jax.numpy as jnp
from jax.experimental import pallas as pl
from jax.experimental.pallas import tpu as pltpu


def _softplus(x):
    # numerically-stable softplus (matches torch.nn.functional.softplus defaults)
    return jnp.where(x > 20.0, x, jnp.log1p(jnp.exp(jnp.minimum(x, 20.0))))


def _round_up(v, m):
    return ((v + m - 1) // m) * m


# --------------------------------------------------------------------------------------
# One-time (init-time) weight packing.  Kept OUT of the per-call path so that the only
# per-step work is the pallas_call itself.
# --------------------------------------------------------------------------------------
def pack_params(params, *, matmul_dtype=jnp.float32):
    """Pack the 4 Linear layers into kernel-ready slabs.

    Slab column layout (width W_out >= 128, multiple of 128):
        [ mu_z (L) | mu_x (D) | raw_std_z (L) | raw_std_x (D) | 0-pad ]
    so the softplus mask is the single contiguous range [L+D, 2*(L+D)).
    """
    f32 = jnp.float32
    w1, b1, w2, b2, w3, b3, w4, b4 = params
    D, H = w1.shape
    L = w2.shape[1] // 2
    assert w4.shape[1] == 2 * D and w3.shape == (L, H)

    W_out = max(128, _round_up(2 * (L + D), 128))

    w2_mu, w2_raw = w2[:, :L], w2[:, L:]
    b2_mu, b2_raw = b2.reshape(1, -1)[:, :L], b2.reshape(1, -1)[:, L:]
    w4_mu, w4_raw = w4[:, :D], w4[:, D:]
    b4_mu, b4_raw = b4.reshape(1, -1)[:, :D], b4.reshape(1, -1)[:, D:]

    w_enc = (jnp.zeros((H, W_out), f32)
             .at[:, 0:L].set(w2_mu)
             .at[:, L + D:2 * L + D].set(w2_raw))
    w_dec = (jnp.zeros((H, W_out), f32)
             .at[:, L:L + D].set(w4_mu)
             .at[:, 2 * L + D:2 * (L + D)].set(w4_raw))
    b_slab = (jnp.zeros((1, W_out), f32)
              .at[:, 0:L].set(b2_mu)
              .at[:, L:L + D].set(b4_mu)
              .at[:, L + D:2 * L + D].set(b2_raw)
              .at[:, 2 * L + D:2 * (L + D)].set(b4_raw))

    md = matmul_dtype
    # MXU-input dtype for weights (bf16 halves weight VMEM/HBM traffic and doubles MXU rate
    # on v5e/v6e); bias add, softplus and the output slab stay f32.
    return (w1.astype(md), b1.reshape(1, -1).astype(f32),
            w2_mu.astype(md), b2_mu.astype(f32),
            w3.astype(md), b3.reshape(1, -1).astype(f32),
            w_enc.astype(md), w_dec.astype(md), b_slab)


# --------------------------------------------------------------------------------------
# Forward pass (per-call path: a single pallas_call).
# --------------------------------------------------------------------------------------
def dist_vae_forward(x, packed, *, tile_b=1024):
    """DistVAE.forward in eval mode. Returns (latent_dist, data_dist, prior, z), each
    distribution a (mean, std) pair. `prior` is returned lazily as scalar (0., 1.) which
    broadcasts against z.shape (== Normal(0, 1).expand(z.shape))."""
    f32 = jnp.float32
    (w1_m, b1, w2mu_m, b2mu, w3_m, b3, wenc_m, wdec_m, b_slab) = packed
    D, H = w1_m.shape
    L = w2mu_m.shape[1]
    W_out = wenc_m.shape[1]
    matmul_dtype = w1_m.dtype

    B, Dx = x.shape
    assert Dx == D, (Dx, D)

    # ---- batch tiling -----------------------------------------------------------------
    # Alignment: bf16 activations pack 16 rows per sublane tile; f32 packs 8.
    align = 16 if matmul_dtype == jnp.bfloat16 else 8
    # Cap TB at ceil(B/2) so there are >= 2 grid steps when B allows -> the "parallel"
    # grid axis actually shards across v7x's 2 TensorCores (no effect on 1-TC v5e/v6e).
    half = _round_up(max(pl.cdiv(B, 2), 1), align)
    TB = max(align, min(int(tile_b), half))
    TB = _round_up(TB, align)
    n_steps = pl.cdiv(B, TB)
    B_pad = n_steps * TB
    x_in = x if B_pad == B else jnp.pad(x, ((0, B_pad - B), (0, 0)))
    # NOTE: x stays f32 in HBM; the cast to matmul_dtype happens inside the kernel.

    def kernel(x_ref, w1_ref, b1_ref, w2mu_ref, b2mu_ref, w3_ref, b3_ref,
               wenc_ref, wdec_ref, bslab_ref, out_ref):
        xt = x_ref[...].astype(matmul_dtype)      # in-kernel cast: free VPU filler
        # encoder layer 1
        h1 = jnp.dot(xt, w1_ref[...], preferred_element_type=f32) + b1_ref[...]
        h1 = jnp.maximum(h1, 0.0).astype(matmul_dtype)
        # latent mean (eval path of DistVAE.forward: z = latent_dist.mean)
        mu_z = jnp.dot(h1, w2mu_ref[...], preferred_element_type=f32) + b2mu_ref[...]
        # decoder layer 1
        h2 = jnp.dot(mu_z.astype(matmul_dtype), w3_ref[...],
                     preferred_element_type=f32) + b3_ref[...]
        h2 = jnp.maximum(h2, 0.0).astype(matmul_dtype)
        # lane-dense output slab [ mu_z | mu_x | raw_z | raw_x | 0-pad ]: one unmasked store
        slab = (jnp.dot(h1, wenc_ref[...], preferred_element_type=f32)
                + jnp.dot(h2, wdec_ref[...], preferred_element_type=f32)
                + bslab_ref[...])
        # std columns are a single contiguous range; (1, W_out) iota broadcast in the where.
        col = jax.lax.broadcasted_iota(jnp.int32, (1, W_out), 1)
        is_std = (col >= L + D) & (col < 2 * (L + D))
        out_ref[...] = jnp.where(is_std, _softplus(slab) + 1e-3, slab)

    def resident(a):  # weights/biases stay VMEM-resident (block index constant across grid)
        return pl.BlockSpec(a.shape, lambda i: (0, 0))

    param_arrays = (w1_m, b1, w2mu_m, b2mu, w3_m, b3, wenc_m, wdec_m, b_slab)
    in_specs = ([pl.BlockSpec((TB, D), lambda i: (i, 0))]
                + [resident(a) for a in param_arrays])
    out_spec = pl.BlockSpec((TB, W_out), lambda i: (i, 0))

    # ---- VMEM budget (real buffer set) --------------------------------------------------
    itemsize = jnp.dtype(matmul_dtype).itemsize
    param_bytes = sum(int(a.size) * a.dtype.itemsize for a in param_arrays)
    tile_bytes = 2 * TB * D * 4 + 2 * TB * W_out * 4      # double-buffered x / out tiles
    inter_bytes = (TB * (2 * H + W_out + L) * 4            # h1, h2, slab, mu_z in f32
                   + TB * (2 * H + D + L) * itemsize)      # casted copies for MXU inputs
    # Pallas double-buffers every input by default, so count resident params twice.
    vmem_bytes = tile_bytes + 2 * param_bytes + inter_bytes + (2 << 20)
    vmem_bytes = int(min(max(vmem_bytes, 4 << 20), 56 << 20))  # <= 56 MiB: safe on v7x (64 MiB)

    flops = 2 * B_pad * (D * H + H * L + L * H + 2 * H * W_out)
    cost = pl.CostEstimate(
        flops=flops,
        transcendentals=B_pad * W_out,
        bytes_accessed=B_pad * D * 4 + B_pad * W_out * 4 + param_bytes)

    slab = pl.pallas_call(
        kernel,
        out_shape=jax.ShapeDtypeStruct((B_pad, W_out), f32),
        grid_spec=pltpu.PrefetchScalarGridSpec(
            num_scalar_prefetch=0,
            grid=(n_steps,),
            in_specs=in_specs,
            out_specs=out_spec,
        ),
        compiler_params=pltpu.CompilerParams(
            dimension_semantics=("parallel",),
            vmem_limit_bytes=vmem_bytes),
        cost_estimate=cost,
    )(x_in, *param_arrays)

    mu_z = slab[:B, 0:L]
    mu_x = slab[:B, L:L + D]
    std_z = slab[:B, L + D:2 * L + D]
    std_x = slab[:B, 2 * L + D:2 * (L + D)]
    z = mu_z  # eval path: z == latent mean; no duplicate kernel output / HBM writeback
    latent_dist = (mu_z, std_z)
    data_dist = (mu_x, std_x)
    # get_latent_prior(z.shape) = Normal(0, 1).expand(z.shape): returned lazily as scalars.
    prior = (jnp.zeros((), f32), jnp.ones((), f32))
    return latent_dist, data_dist, prior, z


def init_params(key, D, H, L):
    """Deterministic PyTorch-Linear-style init (uniform(-1/sqrt(fan_in), 1/sqrt(fan_in)))."""
    keys = jax.random.split(key, 8)

    def lin(kw, kb, fan_in, fan_out):
        bound = 1.0 / jnp.sqrt(jnp.float32(fan_in))
        w = jax.random.uniform(kw, (fan_in, fan_out), jnp.float32, -bound, bound)
        b = jax.random.uniform(kb, (1, fan_out), jnp.float32, -bound, bound)
        return w, b

    w1, b1 = lin(keys[0], keys[1], D, H)        # encoder layer 1
    w2, b2 = lin(keys[2], keys[3], H, 2 * L)    # encoder layer 2 -> [mu_z | raw_std_z]
    w3, b3 = lin(keys[4], keys[5], L, H)        # decoder layer 1
    w4, b4 = lin(keys[6], keys[7], H, 2 * D)    # decoder layer 2 -> [mu_x | raw_std_x]
    return (w1, b1, w2, b2, w3, b3, w4, b4)


def _reference(x, params):
    w1, b1, w2, b2, w3, b3, w4, b4 = params
    h1 = jnp.maximum(x @ w1 + b1, 0.0)
    enc = h1 @ w2 + b2
    L = w2.shape[1] // 2
    mu_z = enc[:, :L]
    std_z = jax.nn.softplus(enc[:, L:]) + 1e-3
    z = mu_z
    h2 = jnp.maximum(z @ w3 + b3, 0.0)
    dec = h2 @ w4 + b4
    D = w4.shape[1] // 2
    mu_x = dec[:, :D]
    std_x = jax.nn.softplus(dec[:, D:]) + 1e-3
    return mu_z, std_z, z, mu_x, std_x


if __name__ == "__main__":
    key = jax.random.PRNGKey(0)
    k_x, k_p = jax.random.split(key)

    B, D, H, L = 256, 16, 32, 8
    x = jax.random.normal(k_x, (B, D), dtype=jnp.float32)
    params = init_params(k_p, D, H, L)
    ref = _reference(x, params)

    # --- f32 MXU path (exact): packing done ONCE, outside the per-call path -------------
    packed_f32 = jax.block_until_ready(pack_params(params, matmul_dtype=jnp.float32))
    fwd = jax.jit(lambda xx, pp: dist_vae_forward(xx, pp, tile_b=1024))
    latent_dist, data_dist, prior, z = jax.block_until_ready(fwd(x, packed_f32))

    got = (latent_dist[0], latent_dist[1], z, data_dist[0], data_dist[1])
    for r, g in zip(ref, got):
        assert r.shape == g.shape and r.dtype == g.dtype
        err = float(jnp.max(jnp.abs(r - g)))
        assert err < 1e-4, err

    # --- bf16 MXU path (default choice for v5e/v6e/v7x inference; f32 epilogue) ---------
    packed_bf16 = jax.block_until_ready(pack_params(params, matmul_dtype=jnp.bfloat16))
    ld16, dd16, _, z16 = jax.block_until_ready(
        dist_vae_forward(x, packed_bf16, tile_b=1024))
    for r, g in zip(ref, (ld16[0], ld16[1], z16, dd16[0], dd16[1])):
        assert r.shape == g.shape
        err = float(jnp.max(jnp.abs(r - g)))
        assert err < 1e-1, err   # bf16 rounding of x/h1/mu_z: looser tolerance

    print("KERNEL_OK")
</pallas_src>

<mosaic_0001>
module attributes {stable_mosaic.version = 11 : i64} {
  func.func @kernel(%arg0: i32, %arg1: memref<128x16xf32, #tpu.memory_space<vmem>>, %arg2: memref<16x32xf32, #tpu.memory_space<vmem>>, %arg3: memref<1x32xf32, #tpu.memory_space<vmem>>, %arg4: memref<32x8xf32, #tpu.memory_space<vmem>>, %arg5: memref<1x8xf32, #tpu.memory_space<vmem>>, %arg6: memref<8x32xf32, #tpu.memory_space<vmem>>, %arg7: memref<1x32xf32, #tpu.memory_space<vmem>>, %arg8: memref<32x128xf32, #tpu.memory_space<vmem>>, %arg9: memref<32x128xf32, #tpu.memory_space<vmem>>, %arg10: memref<1x128xf32, #tpu.memory_space<vmem>>, %arg11: memref<128x128xf32, #tpu.memory_space<vmem>>) attributes {dimension_semantics = [#tpu.dimension_semantics<parallel>], iteration_bounds = array<i64: 2>, scalar_prefetch = 0 : i64, scratch_operands = 0 : i64, tpu.core_type = #tpu.core_type<tc>, window_params = [{transform_indices = @transform_0, window_bounds = array<i64: 128, 16>}, {pipeline_mode = #tpu.pipeline_mode<synchronous>, transform_indices = @transform_1, window_bounds = array<i64: 16, 32>}, {pipeline_mode = #tpu.pipeline_mode<synchronous>, transform_indices = @transform_2, window_bounds = array<i64: 1, 32>}, {pipeline_mode = #tpu.pipeline_mode<synchronous>, transform_indices = @transform_3, window_bounds = array<i64: 32, 8>}, {pipeline_mode = #tpu.pipeline_mode<synchronous>, transform_indices = @transform_4, window_bounds = array<i64: 1, 8>}, {pipeline_mode = #tpu.pipeline_mode<synchronous>, transform_indices = @transform_5, window_bounds = array<i64: 8, 32>}, {pipeline_mode = #tpu.pipeline_mode<synchronous>, transform_indices = @transform_6, window_bounds = array<i64: 1, 32>}, {pipeline_mode = #tpu.pipeline_mode<synchronous>, transform_indices = @transform_7, window_bounds = array<i64: 32, 128>}, {pipeline_mode = #tpu.pipeline_mode<synchronous>, transform_indices = @transform_8, window_bounds = array<i64: 32, 128>}, {pipeline_mode = #tpu.pipeline_mode<synchronous>, transform_indices = @transform_9, window_bounds = array<i64: 1, 128>}, {transform_indices = @transform_10, window_bounds = array<i64: 128, 128>}]} {
    %c0 = arith.constant 0 : index
    %c0_0 = arith.constant 0 : index
    %0 = vector.load %arg1[%c0, %c0_0] : memref<128x16xf32, #tpu.memory_space<vmem>>, vector<128x16xf32>
    %c0_1 = arith.constant 0 : index
    %c0_2 = arith.constant 0 : index
    %1 = vector.load %arg2[%c0_1, %c0_2] : memref<16x32xf32, #tpu.memory_space<vmem>>, vector<16x32xf32>
    %cst = arith.constant dense<0.000000e+00> : vector<128x32xf32>
    %2 = tpu.matmul %0, %1, %cst {dimension_numbers = #tpu.dot_dimension_numbers<[1], [0], [0], [1], [0, 0, 1, 1], [], []>} : vector<128x16xf32>, vector<16x32xf32>, vector<128x32xf32> -> vector<128x32xf32>
    %c0_3 = arith.constant 0 : index
    %c0_4 = arith.constant 0 : index
    %3 = vector.load %arg3[%c0_3, %c0_4] : memref<1x32xf32, #tpu.memory_space<vmem>>, vector<1x32xf32>
    %4 = vector.broadcast %3 : vector<1x32xf32> to vector<128x32xf32>
    %5 = arith.addf %2, %4 : vector<128x32xf32>
    %cst_5 = arith.constant 0.000000e+00 : f32
    %6 = vector.broadcast %cst_5 : f32 to vector<128x32xf32>
    %7 = arith.maximumf %5, %6 : vector<128x32xf32>
    %c0_6 = arith.constant 0 : index
    %c0_7 = arith.constant 0 : index
    %8 = vector.load %arg4[%c0_6, %c0_7] : memref<32x8xf32, #tpu.memory_space<vmem>>, vector<32x8xf32>
    %cst_8 = arith.constant dense<0.000000e+00> : vector<128x8xf32>
    %9 = tpu.matmul %7, %8, %cst_8 {dimension_numbers = #tpu.dot_dimension_numbers<[1], [0], [0], [1], [0, 0, 1, 1], [], []>} : vector<128x32xf32>, vector<32x8xf32>, vector<128x8xf32> -> vector<128x8xf32>
    %c0_9 = arith.constant 0 : index
    %c0_10 = arith.constant 0 : index
    %10 = vector.load %arg5[%c0_9, %c0_10] : memref<1x8xf32, #tpu.memory_space<vmem>>, vector<1x8xf32>
    %11 = vector.broadcast %10 : vector<1x8xf32> to vector<128x8xf32>
    %12 = arith.addf %9, %11 : vector<128x8xf32>
    %c0_11 = arith.constant 0 : index
    %c0_12 = arith.constant 0 : index
    %13 = vector.load %arg6[%c0_11, %c0_12] : memref<8x32xf32, #tpu.memory_space<vmem>>, vector<8x32xf32>
    %cst_13 = arith.constant dense<0.000000e+00> : vector<128x32xf32>
    %14 = tpu.matmul %12, %13, %cst_13 {dimension_numbers = #tpu.dot_dimension_numbers<[1], [0], [0], [1], [0, 0, 1, 1], [], []>} : vector<128x8xf32>, vector<8x32xf32>, vector<128x32xf32> -> vector<128x32xf32>
    %c0_14 = arith.constant 0 : index
    %c0_15 = arith.constant 0 : index
    %15 = vector.load %arg7[%c0_14, %c0_15] : memref<1x32xf32, #tpu.memory_space<vmem>>, vector<1x32xf32>
    %16 = vector.broadcast %15 : vector<1x32xf32> to vector<128x32xf32>
    %17 = arith.addf %14, %16 : vector<128x32xf32>
    %cst_16 = arith.constant 0.000000e+00 : f32
    %18 = vector.broadcast %cst_16 : f32 to vector<128x32xf32>
    %19 = arith.maximumf %17, %18 : vector<128x32xf32>
    %c0_17 = arith.constant 0 : index
    %c0_18 = arith.constant 0 : index
    %20 = vector.load %arg8[%c0_17, %c0_18] : memref<32x128xf32, #tpu.memory_space<vmem>>, vector<32x128xf32>
    %cst_19 = arith.constant dense<0.000000e+00> : vector<128x128xf32>
    %21 = tpu.matmul %7, %20, %cst_19 {dimension_numbers = #tpu.dot_dimension_numbers<[1], [0], [0], [1], [0, 0, 1, 1], [], []>} : vector<128x32xf32>, vector<32x128xf32>, vector<128x128xf32> -> vector<128x128xf32>
    %c0_20 = arith.constant 0 : index
    %c0_21 = arith.constant 0 : index
    %22 = vector.load %arg9[%c0_20, %c0_21] : memref<32x128xf32, #tpu.memory_space<vmem>>, vector<32x128xf32>
    %cst_22 = arith.constant dense<0.000000e+00> : vector<128x128xf32>
    %23 = tpu.matmul %19, %22, %cst_22 {dimension_numbers = #tpu.dot_dimension_numbers<[1], [0], [0], [1], [0, 0, 1, 1], [], []>} : vector<128x32xf32>, vector<32x128xf32>, vector<128x128xf32> -> vector<128x128xf32>
    %24 = arith.addf %21, %23 : vector<128x128xf32>
    %c0_23 = arith.constant 0 : index
    %c0_24 = arith.constant 0 : index
    %25 = vector.load %arg10[%c0_23, %c0_24] : memref<1x128xf32, #tpu.memory_space<vmem>>, vector<1x128xf32>
    %26 = vector.broadcast %25 : vector<1x128xf32> to vector<128x128xf32>
    %27 = arith.addf %24, %26 : vector<128x128xf32>
    %28 = tpu.iota {dimensions = array<i32: 1>} : vector<1x128xi32>
    %c24_i32 = arith.constant 24 : i32
    %29 = vector.broadcast %c24_i32 : i32 to vector<1x128xi32>
    %30 = arith.cmpi sge, %28, %29 : vector<1x128xi32>
    %c48_i32 = arith.constant 48 : i32
    %31 = vector.broadcast %c48_i32 : i32 to vector<1x128xi32>
    %32 = arith.cmpi slt, %28, %31 : vector<1x128xi32>
    %33 = arith.andi %30, %32 : vector<1x128xi1>
    %cst_25 = arith.constant 2.000000e+01 : f32
    %34 = vector.broadcast %cst_25 : f32 to vector<128x128xf32>
    %35 = arith.cmpf ogt, %27, %34 : vector<128x128xf32>
    %cst_26 = arith.constant 2.000000e+01 : f32
    %36 = vector.broadcast %cst_26 : f32 to vector<128x128xf32>
    %37 = arith.minimumf %27, %36 : vector<128x128xf32>
    %38 = math.exp %37 : vector<128x128xf32>
    %39 = math.log1p %38 : vector<128x128xf32>
    %40 = arith.select %35, %27, %39 : vector<128x128xi1>, vector<128x128xf32>
    %cst_27 = arith.constant 1.000000e-03 : f32
    %41 = vector.broadcast %cst_27 : f32 to vector<128x128xf32>
    %42 = arith.addf %40, %41 : vector<128x128xf32>
    %43 = vector.shape_cast %33 : vector<1x128xi1> to vector<1x128xi1>
    %44 = vector.broadcast %43 : vector<1x128xi1> to vector<128x128xi1>
    %45 = arith.select %44, %42, %27 : vector<128x128xi1>, vector<128x128xf32>
    %c0_28 = arith.constant 0 : index
    %c0_29 = arith.constant 0 : index
    %46 = vector.load %arg11[%c0_28, %c0_29] : memref<128x128xf32, #tpu.memory_space<vmem>>, vector<128x128xf32>
    tpu.vector_store %arg11[%c0_28, %c0_29], %45 {strides = array<i32>} : memref<128x128xf32, #tpu.memory_space<vmem>>, vector<128x128xf32>,
    return
  }
  func.func @transform_0(%arg0: i32) -> (i32, i32) {
    %c0_i32 = arith.constant 0 : i32
    %c0_i32_0 = arith.constant 0 : i32
    return %arg0, %c0_i32 : i32, i32
  }
  func.func @transform_1(%arg0: i32) -> (i32, i32) {
    %c0_i32 = arith.constant 0 : i32
    %c0_i32_0 = arith.constant 0 : i32
    %c0_i32_1 = arith.constant 0 : i32
    return %c0_i32, %c0_i32_0 : i32, i32
  }
  func.func @transform_2(%arg0: i32) -> (i32, i32) {
    %c0_i32 = arith.constant 0 : i32
    %c0_i32_0 = arith.constant 0 : i32
    %c0_i32_1 = arith.constant 0 : i32
    return %c0_i32, %c0_i32_0 : i32, i32
  }
  func.func @transform_3(%arg0: i32) -> (i32, i32) {
    %c0_i32 = arith.constant 0 : i32
    %c0_i32_0 = arith.constant 0 : i32
    %c0_i32_1 = arith.constant 0 : i32
    return %c0_i32, %c0_i32_0 : i32, i32
  }
  func.func @transform_4(%arg0: i32) -> (i32, i32) {
    %c0_i32 = arith.constant 0 : i32
    %c0_i32_0 = arith.constant 0 : i32
    %c0_i32_1 = arith.constant 0 : i32
    return %c0_i32, %c0_i32_0 : i32, i32
  }
  func.func @transform_5(%arg0: i32) -> (i32, i32) {
    %c0_i32 = arith.constant 0 : i32
    %c0_i32_0 = arith.constant 0 : i32
    %c0_i32_1 = arith.constant 0 : i32
    return %c0_i32, %c0_i32_0 : i32, i32
  }
  func.func @transform_6(%arg0: i32) -> (i32, i32) {
    %c0_i32 = arith.constant 0 : i32
    %c0_i32_0 = arith.constant 0 : i32
    %c0_i32_1 = arith.constant 0 : i32
    return %c0_i32, %c0_i32_0 : i32, i32
  }
  func.func @transform_7(%arg0: i32) -> (i32, i32) {
    %c0_i32 = arith.constant 0 : i32
    %c0_i32_0 = arith.constant 0 : i32
    %c0_i32_1 = arith.constant 0 : i32
    return %c0_i32, %c0_i32_0 : i32, i32
  }
  func.func @transform_8(%arg0: i32) -> (i32, i32) {
    %c0_i32 = arith.constant 0 : i32
    %c0_i32_0 = arith.constant 0 : i32
    %c0_i32_1 = arith.constant 0 : i32
    return %c0_i32, %c0_i32_0 : i32, i32
  }
  func.func @transform_9(%arg0: i32) -> (i32, i32) {
    %c0_i32 = arith.constant 0 : i32
    %c0_i32_0 = arith.constant 0 : i32
    %c0_i32_1 = arith.constant 0 : i32
    return %c0_i32, %c0_i32_0 : i32, i32
  }
  func.func @transform_10(%arg0: i32) -> (i32, i32) {
    %c0_i32 = arith.constant 0 : i32
    %c0_i32_0 = arith.constant 0 : i32
    return %arg0, %c0_i32 : i32, i32
  }
}

</mosaic_0001>

<llo_original>
// kernel: _lambda_.1
$region0: #{_lambda_.1}
  #allocation0 [shape = 'u32[]', space=smem, size = 0x4, offset = 0x4, fixed_abs, tag = 'smem constant byte address 0x4 - core index']
  #allocation1 [shape = 'u32[144,128]{1,0:T(1,128)}', space=vmem, size = 0x12000, scoped, tag = 'internal scratch']
  %s0 = inlined_call_operand.vmem [shape: f32[256,16], index: 0, kind: input, shape index: {}]
  %s1 = inlined_call_operand.vmem [shape: f32[16,32], index: 1, kind: input, shape index: {}]
  %s2 = inlined_call_operand.vmem [shape: f32[1,32], index: 2, kind: input, shape index: {}]
  %s3 = inlined_call_operand.vmem [shape: f32[32,8], index: 3, kind: input, shape index: {}]
  %s4 = inlined_call_operand.vmem [shape: f32[1,8], index: 4, kind: input, shape index: {}]
  %s5 = inlined_call_operand.vmem [shape: f32[8,32], index: 5, kind: input, shape index: {}]
  %s6 = inlined_call_operand.vmem [shape: f32[1,32], index: 6, kind: input, shape index: {}]
  %s7 = inlined_call_operand.vmem [shape: f32[32,128], index: 7, kind: input, shape index: {}]
  %s8 = inlined_call_operand.vmem [shape: f32[32,128], index: 8, kind: input, shape index: {}]
  %s9 = inlined_call_operand.vmem [shape: f32[1,128], index: 9, kind: input, shape index: {}]
  %s10 = inlined_call_operand.vmem [shape: f32[256,128], index: 10, kind: output, shape index: {}]
  %s11 = sld [smem:[#allocation0]]
  $region73: #{_lambda_.1} parent=0
    _
  %s13 = ssub.s32 1, %s11
  %s14 = scalar_select 0, %s13, %s11
  loop: start=0, step=1, limit=4
  $region2: #{_lambda_.1} parent=0 // loop_pre_header
    _
  $region3: #{_lambda_.1} parent=0 // loop_header
    %s16 = sphi 0, %s20
    %p17 = scmp.ge.s32.totalorder %s16, 4
    %s26 = sphi 0, %s28
    %s29 = sphi 0, %s26
    %s30 = sphi 0, %s29
    %s46 = sphi 0, %s30
    %s50 = sphi 0, %s50
    %s52 = sphi 0, %s50
    %s53 = sphi 0, %s52
    %s67 = sphi 0, %s53
    %s71 = sphi 0, %s71
    %s73 = sphi 0, %s71
    %s74 = sphi 0, %s73
    %s88 = sphi 0, %s74
    %s92 = sphi 0, %s92
    %s94 = sphi 0, %s92
    %s95 = sphi 0, %s94
    %s109 = sphi 0, %s95
    %s113 = sphi 0, %s113
    %s115 = sphi 0, %s113
    %s116 = sphi 0, %s115
    %s130 = sphi 0, %s116
    %s134 = sphi 0, %s134
    %s136 = sphi 0, %s134
    %s137 = sphi 0, %s136
    %s151 = sphi 0, %s137
    %s155 = sphi 0, %s155
    %s157 = sphi 0, %s155
    %s158 = sphi 0, %s157
    %s172 = sphi 0, %s158
    %s176 = sphi 0, %s176
    %s178 = sphi 0, %s176
    %s179 = sphi 0, %s178
    %s193 = sphi 0, %s179
    %s197 = sphi 0, %s197
    %s199 = sphi 0, %s197
    %s200 = sphi 0, %s199
    %s214 = sphi 0, %s200
    %s218 = sphi 0, %s218
    %s220 = sphi 0, %s218
    %s221 = sphi 0, %s220
    %s235 = sphi 0, %s221
    %s241 = sphi 0, %s243
    %s244 = sphi 0, %s241
    %s245 = sphi 0, %s244
    %s261 = sphi 0, %s245
  $region4: #{_lambda_.1} parent=0 // loop_header_branch
    %19 = sbr.rel (%p17) target = $region8
  $region5: #{_lambda_.1} parent=0 // loop_body
    %s21 = ssub.s32 %s16, 1
    %s22 = ssub.s32 %s16, 2
    %s23 = sadd.s32 %s16, 1
    %s24 = ssub.s32 %s16, %s23
    %p25 = scmp.eq.s32.totalorder %s24, 0
    %s27 = sadd.s32 %s26, 1
    %s28 = scalar_select %p25, %s26, %s27
    %p31 = pneg %p25
    %p32 = scmp.eq.s32.totalorder %s16, 1
    %p33 = por %p31, %p32
    %p34 = scmp.ne.s32.totalorder %s26, %s29
    %p35 = scmp.eq.s32.totalorder %s16, 0
    %p36 = por %p34, %p35
    %p37 = scmp.ne.s32.totalorder %s26, %s29
    %p38 = scmp.eq.s32.totalorder %s21, 1
    %p39 = por %p37, %p38
    %p40 = scmp.ne.s32.totalorder %s29, %s30
    %p41 = scmp.eq.s32.totalorder %s21, 0
    %p42 = por %p40, %p41
    %p43 = scmp.ne.s32.totalorder %s29, %s30
    %p44 = scmp.eq.s32.totalorder %s22, 1
    %p45 = por %p43, %p44
    %p47 = scmp.ne.s32.totalorder %s30, %s46
    %p48 = scmp.eq.s32.totalorder %s22, 0
    %p49 = por %p47, %p48
    %s51 = sadd.s32 %s50, 1
    %p54 = scmp.eq.s32.totalorder %s16, 1
    %p55 = scmp.ne.s32.totalorder %s50, %s52
    %p56 = scmp.eq.s32.totalorder %s16, 0
    %p57 = por %p55, %p56
    %p58 = scmp.ne.s32.totalorder %s50, %s52
    %p59 = scmp.eq.s32.totalorder %s21, 1
    %p60 = por %p58, %p59
    %p61 = scmp.ne.s32.totalorder %s52, %s53
    %p62 = scmp.eq.s32.totalorder %s21, 0
    %p63 = por %p61, %p62
    %p64 = scmp.ne.s32.totalorder %s52, %s53
    %p65 = scmp.eq.s32.totalorder %s22, 1
    %p66 = por %p64, %p65
    %p68 = scmp.ne.s32.totalorder %s53, %s67
    %p69 = scmp.eq.s32.totalorder %s22, 0
    %p70 = por %p68, %p69
    %s72 = sadd.s32 %s71, 1
    %p75 = scmp.eq.s32.totalorder %s16, 1
    %p76 = scmp.ne.s32.totalorder %s71, %s73
    %p77 = scmp.eq.s32.totalorder %s16, 0
    %p78 = por %p76, %p77
    %p79 = scmp.ne.s32.totalorder %s71, %s73
    %p80 = scmp.eq.s32.totalorder %s21, 1
    %p81 = por %p79, %p80
    %p82 = scmp.ne.s32.totalorder %s73, %s74
    %p83 = scmp.eq.s32.totalorder %s21, 0
    %p84 = por %p82, %p83
    %p85 = scmp.ne.s32.totalorder %s73, %s74
    %p86 = scmp.eq.s32.totalorder %s22, 1
    %p87 = por %p85, %p86
    %p89 = scmp.ne.s32.totalorder %s74, %s88
    %p90 = scmp.eq.s32.totalorder %s22, 0
    %p91 = por %p89, %p90
    %s93 = sadd.s32 %s92, 1
    %p96 = scmp.eq.s32.totalorder %s16, 1
    %p97 = scmp.ne.s32.totalorder %s92, %s94
    %p98 = scmp.eq.s32.totalorder %s16, 0
    %p99 = por %p97, %p98
    %p100 = scmp.ne.s32.totalorder %s92, %s94
    %p101 = scmp.eq.s32.totalorder %s21, 1
    %p102 = por %p100, %p101
    %p103 = scmp.ne.s32.totalorder %s94, %s95
    %p104 = scmp.eq.s32.totalorder %s21, 0
    %p105 = por %p103, %p104
    %p106 = scmp.ne.s32.totalorder %s94, %s95
    %p107 = scmp.eq.s32.totalorder %s22, 1
    %p108 = por %p106, %p107
    %p110 = scmp.ne.s32.totalorder %s95, %s109
    %p111 = scmp.eq.s32.totalorder %s22, 0
    %p112 = por %p110, %p111
    %s114 = sadd.s32 %s113, 1
    %p117 = scmp.eq.s32.totalorder %s16, 1
    %p118 = scmp.ne.s32.totalorder %s113, %s115
    %p119 = scmp.eq.s32.totalorder %s16, 0
    %p120 = por %p118, %p119
    %p121 = scmp.ne.s32.totalorder %s113, %s115
    %p122 = scmp.eq.s32.totalorder %s21, 1
    %p123 = por %p121, %p122
    %p124 = scmp.ne.s32.totalorder %s115, %s116
    %p125 = scmp.eq.s32.totalorder %s21, 0
    %p126 = por %p124, %p125
    %p127 = scmp.ne.s32.totalorder %s115, %s116
    %p128 = scmp.eq.s32.totalorder %s22, 1
    %p129 = por %p127, %p128
    %p131 = scmp.ne.s32.totalorder %s116, %s130
    %p132 = scmp.eq.s32.totalorder %s22, 0
    %p133 = por %p131, %p132
    %s135 = sadd.s32 %s134, 1
    %p138 = scmp.eq.s32.totalorder %s16, 1
    %p139 = scmp.ne.s32.totalorder %s134, %s136
    %p140 = scmp.eq.s32.totalorder %s16, 0
    %p141 = por %p139, %p140
    %p142 = scmp.ne.s32.totalorder %s134, %s136
    %p143 = scmp.eq.s32.totalorder %s21, 1
    %p144 = por %p142, %p143
    %p145 = scmp.ne.s32.totalorder %s136, %s137
    %p146 = scmp.eq.s32.totalorder %s21, 0
    %p147 = por %p145, %p146
    %p148 = scmp.ne.s32.totalorder %s136, %s137
    %p149 = scmp.eq.s32.totalorder %s22, 1
    %p150 = por %p148, %p149
    %p152 = scmp.ne.s32.totalorder %s137, %s151
    %p153 = scmp.eq.s32.totalorder %s22, 0
    %p154 = por %p152, %p153
    %s156 = sadd.s32 %s155, 1
    %p159 = scmp.eq.s32.totalorder %s16, 1
    %p160 = scmp.ne.s32.totalorder %s155, %s157
    %p161 = scmp.eq.s32.totalorder %s16, 0
    %p162 = por %p160, %p161
    %p163 = scmp.ne.s32.totalorder %s155, %s157
    %p164 = scmp.eq.s32.totalorder %s21, 1
    %p165 = por %p163, %p164
    %p166 = scmp.ne.s32.totalorder %s157, %s158
    %p167 = scmp.eq.s32.totalorder %s21, 0
    %p168 = por %p166, %p167
    %p169 = scmp.ne.s32.totalorder %s157, %s158
    %p170 = scmp.eq.s32.totalorder %s22, 1
    %p171 = por %p169, %p170
    %p173 = scmp.ne.s32.totalorder %s158, %s172
    %p174 = scmp.eq.s32.totalorder %s22, 0
    %p175 = por %p173, %p174
    %s177 = sadd.s32 %s176, 1
    %p180 = scmp.eq.s32.totalorder %s16, 1
    %p181 = scmp.ne.s32.totalorder %s176, %s178
    %p182 = scmp.eq.s32.totalorder %s16, 0
    %p183 = por %p181, %p182
    %p184 = scmp.ne.s32.totalorder %s176, %s178
    %p185 = scmp.eq.s32.totalorder %s21, 1
    %p186 = por %p184, %p185
    %p187 = scmp.ne.s32.totalorder %s178, %s179
    %p188 = scmp.eq.s32.totalorder %s21, 0
    %p189 = por %p187, %p188
    %p190 = scmp.ne.s32.totalorder %s178, %s179
    %p191 = scmp.eq.s32.totalorder %s22, 1
    %p192 = por %p190, %p191
    %p194 = scmp.ne.s32.totalorder %s179, %s193
    %p195 = scmp.eq.s32.totalorder %s22, 0
    %p196 = por %p194, %p195
    %s198 = sadd.s32 %s197, 1
    %p201 = scmp.eq.s32.totalorder %s16, 1
    %p202 = scmp.ne.s32.totalorder %s197, %s199
    %p203 = scmp.eq.s32.totalorder %s16, 0
    %p204 = por %p202, %p203
    %p205 = scmp.ne.s32.totalorder %s197, %s199
    %p206 = scmp.eq.s32.totalorder %s21, 1
    %p207 = por %p205, %p206
    %p208 = scmp.ne.s32.totalorder %s199, %s200
    %p209 = scmp.eq.s32.totalorder %s21, 0
    %p210 = por %p208, %p209
    %p211 = scmp.ne.s32.totalorder %s199, %s200
    %p212 = scmp.eq.s32.totalorder %s22, 1
    %p213 = por %p211, %p212
    %p215 = scmp.ne.s32.totalorder %s200, %s214
    %p216 = scmp.eq.s32.totalorder %s22, 0
    %p217 = por %p215, %p216
    %s219 = sadd.s32 %s218, 1
    %p222 = scmp.eq.s32.totalorder %s16, 1
    %p223 = scmp.ne.s32.totalorder %s218, %s220
    %p224 = scmp.eq.s32.totalorder %s16, 0
    %p225 = por %p223, %p224
    %p226 = scmp.ne.s32.totalorder %s218, %s220
    %p227 = scmp.eq.s32.totalorder %s21, 1
    %p228 = por %p226, %p227
    %p229 = scmp.ne.s32.totalorder %s220, %s221
    %p230 = scmp.eq.s32.totalorder %s21, 0
    %p231 = por %p229, %p230
    %p232 = scmp.ne.s32.totalorder %s220, %s221
    %p233 = scmp.eq.s32.totalorder %s22, 1
    %p234 = por %p232, %p233
    %p236 = scmp.ne.s32.totalorder %s221, %s235
    %p237 = scmp.eq.s32.totalorder %s22, 0
    %p238 = por %p236, %p237
    %s239 = ssub.s32 %s16, %s23
    %p240 = scmp.eq.s32.totalorder %s239, 0
    %s242 = sadd.s32 %s241, 1
    %s243 = scalar_select %p240, %s241, %s242
    %p246 = pneg %p240
    %p247 = scmp.eq.s32.totalorder %s16, 1
    %p248 = por %p246, %p247
    %p249 = scmp.ne.s32.totalorder %s241, %s244
    %p250 = scmp.eq.s32.totalorder %s16, 0
    %p251 = por %p249, %p250
    %p252 = scmp.ne.s32.totalorder %s241, %s244
    %p253 = scmp.eq.s32.totalorder %s21, 1
    %p254 = por %p252, %p253
    %p255 = scmp.ne.s32.totalorder %s244, %s245
    %p256 = scmp.eq.s32.totalorder %s21, 0
    %p257 = por %p255, %p256
    %p258 = scmp.ne.s32.totalorder %s244, %s245
    %p259 = scmp.eq.s32.totalorder %s22, 1
    %p260 = por %p258, %p259
    %p262 = scmp.ne.s32.totalorder %s245, %s261
    %p263 = scmp.eq.s32.totalorder %s22, 0
    %p264 = por %p262, %p263
    %p265 = scmp.le.s32.totalorder 1, %s16
    %p266 = scmp.lt.s32.totalorder %s16, 3
    %p267 = pnand %p265, %p266
    %p268 = pneg %p267
    // Predicated region
    $region9: #{_lambda_.1} parent=5 // pred_check
      _
    $region10: #{_lambda_.1} parent=5 // pred_check_branch
      %270 = sbr.rel (%p267) target = $region12
    $region11: #{_lambda_.1} parent=5 // pred_region
      %s271 = ssub.s32 %s16, 1
      // Predicated region
      $region13: #{_lambda_.1} parent=11 // pred_check
        %p272 = pneg %p63
      $region14: #{_lambda_.1} parent=11 // pred_check_branch
        %274 = sbr.rel (%p272) target = $region16
      $region15: #{_lambda_.1} parent=11 // pred_region
        _
      $region16: #{_lambda_.1} parent=11 // pred_fallthru
        _
      // Predicated region
      $region17: #{_lambda_.1} parent=11 // pred_check
        %p275 = pneg %p84
      $region18: #{_lambda_.1} parent=11 // pred_check_branch
        %277 = sbr.rel (%p275) target = $region20
      $region19: #{_lambda_.1} parent=11 // pred_region
        _
      $region20: #{_lambda_.1} parent=11 // pred_fallthru
        _
      // Predicated region
      $region21: #{_lambda_.1} parent=11 // pred_check
        %p278 = pneg %p105
      $region22: #{_lambda_.1} parent=11 // pred_check_branch
        %280 = sbr.rel (%p278) target = $region24
      $region23: #{_lambda_.1} parent=11 // pred_region
        _
      $region24: #{_lambda_.1} parent=11 // pred_fallthru
        _
      // Predicated region
      $region25: #{_lambda_.1} parent=11 // pred_check
        %p281 = pneg %p126
      $region26: #{_lambda_.1} parent=11 // pred_check_branch
        %283 = sbr.rel (%p281) target = $region28
      $region27: #{_lambda_.1} parent=11 // pred_region
        _
      $region28: #{_lambda_.1} parent=11 // pred_fallthru
        _
      // Predicated region
      $region29: #{_lambda_.1} parent=11 // pred_check
        %p284 = pneg %p147
      $region30: #{_lambda_.1} parent=11 // pred_check_branch
        %286 = sbr.rel (%p284) target = $region32
      $region31: #{_lambda_.1} parent=11 // pred_region
        _
      $region32: #{_lambda_.1} parent=11 // pred_fallthru
        _
      // Predicated region
      $region33: #{_lambda_.1} parent=11 // pred_check
        %p287 = pneg %p168
      $region34: #{_lambda_.1} parent=11 // pred_check_branch
        %289 = sbr.rel (%p287) target = $region36
      $region35: #{_lambda_.1} parent=11 // pred_region
        _
      $region36: #{_lambda_.1} parent=11 // pred_fallthru
        _
      // Predicated region
      $region37: #{_lambda_.1} parent=11 // pred_check
        %p290 = pneg %p189
      $region38: #{_lambda_.1} parent=11 // pred_check_branch
        %292 = sbr.rel (%p290) target = $region40
      $region39: #{_lambda_.1} parent=11 // pred_region
        _
      $region40: #{_lambda_.1} parent=11 // pred_fallthru
        _
      // Predicated region
      $region41: #{_lambda_.1} parent=11 // pred_check
        %p293 = pneg %p210
      $region42: #{_lambda_.1} parent=11 // pred_check_branch
        %295 = sbr.rel (%p293) target = $region44
      $region43: #{_lambda_.1} parent=11 // pred_region
        _
      $region44: #{_lambda_.1} parent=11 // pred_fallthru
        _
      // Predicated region
      $region45: #{_lambda_.1} parent=11 // pred_check
        %p296 = pneg %p231
      $region46: #{_lambda_.1} parent=11 // pred_check_branch
        %298 = sbr.rel (%p296) target = $region48
      $region47: #{_lambda_.1} parent=11 // pred_region
        _
      $region48: #{_lambda_.1} parent=11 // pred_fallthru
        _
    $region12: #{_lambda_.1} parent=5 // pred_fallthru
      _
    %p299 = scmp.lt.s32.totalorder %s16, 2
    // Predicated region
    $region49: #{_lambda_.1} parent=5 // pred_check
      %p300 = pneg %p299
    $region50: #{_lambda_.1} parent=5 // pred_check_branch
      %302 = sbr.rel (%p300) target = $region52
    $region51: #{_lambda_.1} parent=5 // pred_region
      // Predicated region
      $region53: #{_lambda_.1} parent=51 // pred_check
        %p303 = pneg %p36
      $region54: #{_lambda_.1} parent=51 // pred_check_branch
        %305 = sbr.rel (%p303) target = $region56
      $region55: #{_lambda_.1} parent=51 // pred_region
        %s306 = smul.u32 16, %s16
        %p307 = scmp.lt.s32.totalorder %s306, 31
        %s308 = scalar_select %p307, %s306, 31
        %s309 = smul.addr %s308, 8
        %s310 = scalar_lea.vmem %s0, %s309
        %s311 = smul.u32 16, %s16
      $region56: #{_lambda_.1} parent=51 // pred_fallthru
        _
    $region52: #{_lambda_.1} parent=5 // pred_fallthru
      _
    %p312 = scmp.le.s32.totalorder 1, %s16
    %p313 = scmp.lt.s32.totalorder %s16, 3
    %p314 = pnand %p312, %p313
    %p315 = pneg %p314
    // Predicated region
    $region57: #{_lambda_.1} parent=5 // pred_check
      _
    $region58: #{_lambda_.1} parent=5 // pred_check_branch
      %317 = sbr.rel (%p314) target = $region60
    $region59: #{_lambda_.1} parent=5 // pred_region
      %s318 = ssub.s32 %s16, 1
      %s319 = smul.u32 16, %s21
      %p320 = scmp.lt.s32.totalorder %s319, 31
      %s321 = scalar_select %p320, %s319, 31
      %s322 = smul.addr %s321, 8
      %s323 = scalar_lea.vmem %s0, %s322
      %p324 = pneg %p42
      %p325 = pneg %p39
      %p326 = pneg %p63
      %p327 = pneg %p60
      %p328 = pneg %p84
      %p329 = pneg %p81
      %p330 = pneg %p105
      %p331 = pneg %p102
      %p332 = pneg %p126
      %p333 = pneg %p123
      %p334 = pneg %p147
      %p335 = pneg %p144
      %p336 = pneg %p168
      %p337 = pneg %p165
      %p338 = pneg %p189
      %p339 = pneg %p186
      %p340 = pneg %p210
      %p341 = pneg %p207
      %p342 = pneg %p231
      %p343 = pneg %p228
      %p344 = pneg %p257
      %p345 = pneg %p254
      %s346 = smul.u32 16, %s21
      %p347 = scmp.lt.s32.totalorder %s346, 31
      %s348 = scalar_select %p347, %s346, 31
      %s349 = smul.addr %s348, 8
      %s350 = scalar_lea.vmem %s10, %s349
      %s351 = smul.u32 16, %s21
      %p352 = scmp.lt.s32.totalorder %s351, 31
      %s353 = scalar_select %p352, %s351, 31
      %s354 = smul.addr %s353, 8
      %s355 = scalar_lea.vmem %s0, %s354
      %s356 = smul.u32 16, %s21
      %s357 = smul.u32 16, %s21
      %p358 = scmp.lt.s32.totalorder %s357, 31
      %s359 = scalar_select %p358, %s357, 31
      %s360 = smul.addr %s359, 8
      %s361 = scalar_lea.vmem %s10, %s360
      %s362 = smul.u32 16, %s21
      %v363 = vld [vmem:[%s355] sm:$0xff]
      %v364 = vld [vmem:[%s355 + $0x8] sm:$0xff]
      %v365 = vld [vmem:[%s355 + $0x10] sm:$0xff]
      %v366 = vld [vmem:[%s355 + $0x18] sm:$0xff]
      %v367 = vld [vmem:[%s355 + $0x20] sm:$0xff]
      %v368 = vld [vmem:[%s355 + $0x28] sm:$0xff]
      %v369 = vld [vmem:[%s355 + $0x30] sm:$0xff]
      %v370 = vld [vmem:[%s355 + $0x38] sm:$0xff]
      %v371 = vld [vmem:[%s355 + $0x40] sm:$0xff]
      %v372 = vld [vmem:[%s355 + $0x48] sm:$0xff]
      %v373 = vld [vmem:[%s355 + $0x50] sm:$0xff]
      %v374 = vld [vmem:[%s355 + $0x58] sm:$0xff]
      %v375 = vld [vmem:[%s355 + $0x60] sm:$0xff]
      %v376 = vld [vmem:[%s355 + $0x68] sm:$0xff]
      %v377 = vld [vmem:[%s355 + $0x70] sm:$0xff]
      %v378 = vld [vmem:[%s355 + $0x78] sm:$0xff]
      %v379 = vld [vmem:[%s1] sm:$0xff]
      %v380 = vld [vmem:[%s1 + $0x8] sm:$0xff]
      %v381 = vld [vmem:[%s2] sm:$0x1]
      %v383 = vlaneseq
      %v384 = vshrl.u32 %v383, 7
      %v385 = vsub.s32 0, %v384
      %v386 = vrot.slane %v381, %v385
      %vm388 = vcmask 130048
      %v390 = vsel %vm388, %v363, 0
      %v393 = vsel %vm388, %v364, 0
      %v396 = vsel %vm388, %v365, 0
      %v399 = vsel %vm388, %v366, 0
      %v402 = vsel %vm388, %v367, 0
      %v405 = vsel %vm388, %v368, 0
      %v408 = vsel %vm388, %v369, 0
      %v411 = vsel %vm388, %v370, 0
      %v414 = vsel %vm388, %v371, 0
      %v417 = vsel %vm388, %v372, 0
      %v420 = vsel %vm388, %v373, 0
      %v423 = vsel %vm388, %v374, 0
      %v426 = vsel %vm388, %v375, 0
      %v429 = vsel %vm388, %v376, 0
      %v432 = vsel %vm388, %v377, 0
      %v435 = vsel %vm388, %v378, 0
      %437 = vmatprep.subr.mxu0 0.0
      %438 = vmatpush1.msra.mxu0 %v379
      %439 = vmatprep.subr.mxu0 0.0
      %440 = vmatpush1.msra.mxu0 %v380
      %441 = vmatprep.subr.mxu0 0.0
      %442 = vmatpush1.msra.mxu0 0.0
      %443 = vmatprep.subr.mxu0 0.0
      %444 = vmatpush1.msra.mxu0 0.0
      %445 = vmatprep.subr.mxu0 0.0
      %446 = vmatpush1.msra.mxu0 0.0
      %447 = vmatprep.subr.mxu0 0.0
      %448 = vmatpush1.msra.mxu0 0.0
      %449 = vmatprep.subr.mxu0 0.0
      %450 = vmatpush1.msra.mxu0 0.0
      %451 = vmatprep.subr.mxu0 0.0
      %452 = vmatpush1.msra.mxu0 0.0
      %453 = vmatprep.subr.mxu0 0.0
      %454 = vmatpush1.msra.mxu0 0.0
      %455 = vmatprep.subr.mxu0 0.0
      %456 = vmatpush1.msra.mxu0 0.0
      %457 = vmatprep.subr.mxu0 0.0
      %458 = vmatpush1.msra.mxu0 0.0
      %459 = vmatprep.subr.mxu0 0.0
      %460 = vmatpush1.msra.mxu0 0.0
      %461 = vmatprep.subr.mxu0 0.0
      %462 = vmatpush1.msra.mxu0 0.0
      %463 = vmatprep.subr.mxu0 0.0
      %464 = vmatpush1.msra.mxu0 0.0
      %465 = vmatprep.subr.mxu0 0.0
      %466 = vmatpush1.msra.mxu0 0.0
      %467 = vmatprep.subr.mxu0 0.0
      %468 = vmatpush1.msra.mxu0 0.0
      %469 = vmatprep.subr.mxu0 0.0
      %470 = vmatpush1.msra.mxu0 0.0
      %471 = vmatprep.subr.mxu0 0.0
      %472 = vmatpush1.msra.mxu0 0.0
      %473 = vmatprep.subr.mxu0 0.0
      %474 = vmatpush1.msra.mxu0 0.0
      %475 = vmatprep.subr.mxu0 0.0
      %476 = vmatpush1.msra.mxu0 0.0
      %477 = vmatprep.subr.mxu0 0.0
      %478 = vmatpush1.msra.mxu0 0.0
      %479 = vmatprep.subr.mxu0 0.0
      %480 = vmatpush1.msra.mxu0 0.0
      %481 = vmatprep.subr.mxu0 0.0
      %482 = vmatpush1.msra.mxu0 0.0
      %483 = vmatprep.subr.mxu0 0.0
      %484 = vmatpush1.msra.mxu0 0.0
      %485 = vmatprep.subr.mxu0 0.0
      %486 = vmatpush1.msra.mxu0 0.0
      %487 = vmatprep.subr.mxu0 0.0
      %488 = vmatpush1.msra.mxu0 0.0
      %489 = vmatprep.subr.mxu0 0.0
      %490 = vmatpush1.msra.mxu0 0.0
      %491 = vmatprep.subr.mxu0 0.0
      %492 = vmatpush1.msra.mxu0 0.0
      %493 = vmatprep.subr.mxu0 0.0
      %494 = vmatpush1.msra.mxu0 0.0
      %495 = vmatprep.subr.mxu0 0.0
      %496 = vmatpush1.msra.mxu0 0.0
      %497 = vmatprep.subr.mxu0 0.0
      %498 = vmatpush1.msra.mxu0 0.0
      %499 = vmatprep.subr.mxu0 0.0
      %500 = vmatpush1.msra.mxu0 0.0
      %501 = vmatprep.mubr.f32.mxu0 0.0
      %502 = vmatmul.mubr.f32.gmra.mrb[0].mxu0 %v390
      %v503 = vpop.f32.mrb[0].mxu0
      %v504 = vadd.f32 %v386, %v503
      %v505 = vpop.f32.mrb[0].mxu0
      %506 = vmatprep.mubr.f32.mxu0 0.0
      %507 = vmatmul.mubr.f32.gmra.mrb[0].mxu0 %v393
      %v508 = vpop.f32.mrb[0].mxu0
      %v509 = vadd.f32 %v386, %v508
      %v510 = vpop.f32.mrb[0].mxu0
      %511 = vmatprep.mubr.f32.mxu0 0.0
      %512 = vmatmul.mubr.f32.gmra.mrb[0].mxu0 %v396
      %v513 = vpop.f32.mrb[0].mxu0
      %v514 = vadd.f32 %v386, %v513
      %v515 = vpop.f32.mrb[0].mxu0
      %516 = vmatprep.mubr.f32.mxu0 0.0
      %517 = vmatmul.mubr.f32.gmra.mrb[0].mxu0 %v399
      %v518 = vpop.f32.mrb[0].mxu0
      %v519 = vadd.f32 %v386, %v518
      %v520 = vpop.f32.mrb[0].mxu0
      %521 = vmatprep.mubr.f32.mxu0 0.0
      %522 = vmatmul.mubr.f32.gmra.mrb[0].mxu0 %v402
      %v523 = vpop.f32.mrb[0].mxu0
      %v524 = vadd.f32 %v386, %v523
      %v525 = vpop.f32.mrb[0].mxu0
      %526 = vmatprep.mubr.f32.mxu0 0.0
      %527 = vmatmul.mubr.f32.gmra.mrb[0].mxu0 %v405
      %v528 = vpop.f32.mrb[0].mxu0
      %v529 = vadd.f32 %v386, %v528
      %v530 = vpop.f32.mrb[0].mxu0
      %531 = vmatprep.mubr.f32.mxu0 0.0
      %532 = vmatmul.mubr.f32.gmra.mrb[0].mxu0 %v408
      %v533 = vpop.f32.mrb[0].mxu0
      %v534 = vadd.f32 %v386, %v533
      %v535 = vpop.f32.mrb[0].mxu0
      %536 = vmatprep.mubr.f32.mxu0 0.0
      %537 = vmatmul.mubr.f32.gmra.mrb[0].mxu0 %v411
      %v538 = vpop.f32.mrb[0].mxu0
      %v539 = vadd.f32 %v386, %v538
      %v540 = vpop.f32.mrb[0].mxu0
      %541 = vmatprep.mubr.f32.mxu0 0.0
      %542 = vmatmul.mubr.f32.gmra.mrb[0].mxu0 %v414
      %v543 = vpop.f32.mrb[0].mxu0
      %v544 = vadd.f32 %v386, %v543
      %v545 = vpop.f32.mrb[0].mxu0
      %546 = vmatprep.mubr.f32.mxu0 0.0
      %547 = vmatmul.mubr.f32.gmra.mrb[0].mxu0 %v417
      %v548 = vpop.f32.mrb[0].mxu0
      %v549 = vadd.f32 %v386, %v548
      %v550 = vpop.f32.mrb[0].mxu0
      %551 = vmatprep.mubr.f32.mxu0 0.0
      %552 = vmatmul.mubr.f32.gmra.mrb[0].mxu0 %v420
      %v553 = vpop.f32.mrb[0].mxu0
      %v554 = vadd.f32 %v386, %v553
      %v555 = vpop.f32.mrb[0].mxu0
      %556 = vmatprep.mubr.f32.mxu0 0.0
      %557 = vmatmul.mubr.f32.gmra.mrb[0].mxu0 %v423
      %v558 = vpop.f32.mrb[0].mxu0
      %v559 = vadd.f32 %v386, %v558
      %v560 = vpop.f32.mrb[0].mxu0
      %561 = vmatprep.mubr.f32.mxu0 0.0
      %562 = vmatmul.mubr.f32.gmra.mrb[0].mxu0 %v426
      %v563 = vpop.f32.mrb[0].mxu0
      %v564 = vadd.f32 %v386, %v563
      %v565 = vpop.f32.mrb[0].mxu0
      %566 = vmatprep.mubr.f32.mxu0 0.0
      %567 = vmatmul.mubr.f32.gmra.mrb[0].mxu0 %v429
      %v568 = vpop.f32.mrb[0].mxu0
      %v569 = vadd.f32 %v386, %v568
      %v570 = vpop.f32.mrb[0].mxu0
      %571 = vmatprep.mubr.f32.mxu0 0.0
      %572 = vmatmul.mubr.f32.gmra.mrb[0].mxu0 %v432
      %v573 = vpop.f32.mrb[0].mxu0
      %v574 = vadd.f32 %v386, %v573
      %v575 = vpop.f32.mrb[0].mxu0
      %576 = vmatprep.mubr.f32.mxu0 0.0
      %577 = vmatmul.mubr.f32.gmra.mrb[0].mxu0 %v435
      %v578 = vpop.f32.mrb[0].mxu0
      %v579 = vadd.f32 %v386, %v578
      %v580 = vpop.f32.mrb[0].mxu0
      %581 = vdwg.mxu0
      %v582 = vmax.f32 %v504, 0.0
      %v583 = vmax.f32 %v509, 0.0
      %v584 = vmax.f32 %v514, 0.0
      %v585 = vmax.f32 %v519, 0.0
      %v586 = vmax.f32 %v524, 0.0
      %v587 = vmax.f32 %v529, 0.0
      %v588 = vmax.f32 %v534, 0.0
      %v589 = vmax.f32 %v539, 0.0
      %v590 = vmax.f32 %v544, 0.0
      %v591 = vmax.f32 %v549, 0.0
      %v592 = vmax.f32 %v554, 0.0
      %v593 = vmax.f32 %v559, 0.0
      %v594 = vmax.f32 %v564, 0.0
      %v595 = vmax.f32 %v569, 0.0
      %v596 = vmax.f32 %v574, 0.0
      %v597 = vmax.f32 %v579, 0.0
      %v598 = vld [vmem:[%s3] sm:$0xff]
      %v599 = vld [vmem:[%s3 + $0x8] sm:$0xff]
      %v600 = vld [vmem:[%s3 + $0x10] sm:$0xff]
      %v601 = vld [vmem:[%s3 + $0x18] sm:$0xff]
      %v602 = vld [vmem:[%s4] sm:$0x1]
      %v604 = vlaneseq
      %v605 = vshrl.u32 %v604, 7
      %v606 = vsub.s32 0, %v605
      %v607 = vrot.slane %v602, %v606
      %vm609 = vcmask 261120
      %v611 = vsel %vm609, %v582, 0
      %v614 = vsel %vm609, %v583, 0
      %v617 = vsel %vm609, %v584, 0
      %v620 = vsel %vm609, %v585, 0
      %v623 = vsel %vm609, %v586, 0
      %v626 = vsel %vm609, %v587, 0
      %v629 = vsel %vm609, %v588, 0
      %v632 = vsel %vm609, %v589, 0
      %v635 = vsel %vm609, %v590, 0
      %v638 = vsel %vm609, %v591, 0
      %v641 = vsel %vm609, %v592, 0
      %v644 = vsel %vm609, %v593, 0
      %v647 = vsel %vm609, %v594, 0
      %v650 = vsel %vm609, %v595, 0
      %v653 = vsel %vm609, %v596, 0
      %v656 = vsel %vm609, %v597, 0
      %658 = vmatprep.subr.mxu0 0.0
      %659 = vmatpush1.msra.mxu0 %v598
      %660 = vmatprep.subr.mxu0 0.0
      %661 = vmatpush1.msra.mxu0 %v599
      %662 = vmatprep.subr.mxu0 0.0
      %663 = vmatpush1.msra.mxu0 %v600
      %664 = vmatprep.subr.mxu0 0.0
      %665 = vmatpush1.msra.mxu0 %v601
      %666 = vmatprep.subr.mxu0 0.0
      %667 = vmatpush1.msra.mxu0 0.0
      %668 = vmatprep.subr.mxu0 0.0
      %669 = vmatpush1.msra.mxu0 0.0
      %670 = vmatprep.subr.mxu0 0.0
      %671 = vmatpush1.msra.mxu0 0.0
      %672 = vmatprep.subr.mxu0 0.0
      %673 = vmatpush1.msra.mxu0 0.0
      %674 = vmatprep.subr.mxu0 0.0
      %675 = vmatpush1.msra.mxu0 0.0
      %676 = vmatprep.subr.mxu0 0.0
      %677 = vmatpush1.msra.mxu0 0.0
      %678 = vmatprep.subr.mxu0 0.0
      %679 = vmatpush1.msra.mxu0 0.0
      %680 = vmatprep.subr.mxu0 0.0
      %681 = vmatpush1.msra.mxu0 0.0
      %682 = vmatprep.subr.mxu0 0.0
      %683 = vmatpush1.msra.mxu0 0.0
      %684 = vmatprep.subr.mxu0 0.0
      %685 = vmatpush1.msra.mxu0 0.0
      %686 = vmatprep.subr.mxu0 0.0
      %687 = vmatpush1.msra.mxu0 0.0
      %688 = vmatprep.subr.mxu0 0.0
      %689 = vmatpush1.msra.mxu0 0.0
      %690 = vmatprep.subr.mxu0 0.0
      %691 = vmatpush1.msra.mxu0 0.0
      %692 = vmatprep.subr.mxu0 0.0
      %693 = vmatpush1.msra.mxu0 0.0
      %694 = vmatprep.subr.mxu0 0.0
      %695 = vmatpush1.msra.mxu0 0.0
      %696 = vmatprep.subr.mxu0 0.0
      %697 = vmatpush1.msra.mxu0 0.0
      %698 = vmatprep.subr.mxu0 0.0
      %699 = vmatpush1.msra.mxu0 0.0
      %700 = vmatprep.subr.mxu0 0.0
      %701 = vmatpush1.msra.mxu0 0.0
      %702 = vmatprep.subr.mxu0 0.0
      %703 = vmatpush1.msra.mxu0 0.0
      %704 = vmatprep.subr.mxu0 0.0
      %705 = vmatpush1.msra.mxu0 0.0
      %706 = vmatprep.subr.mxu0 0.0
      %707 = vmatpush1.msra.mxu0 0.0
      %708 = vmatprep.subr.mxu0 0.0
      %709 = vmatpush1.msra.mxu0 0.0
      %710 = vmatprep.subr.mxu0 0.0
      %711 = vmatpush1.msra.mxu0 0.0
      %712 = vmatprep.subr.mxu0 0.0
      %713 = vmatpush1.msra.mxu0 0.0
      %714 = vmatprep.subr.mxu0 0.0
      %715 = vmatpush1.msra.mxu0 0.0
      %716 = vmatprep.subr.mxu0 0.0
      %717 = vmatpush1.msra.mxu0 0.0
      %718 = vmatprep.subr.mxu0 0.0
      %719 = vmatpush1.msra.mxu0 0.0
      %720 = vmatprep.subr.mxu0 0.0
      %721 = vmatpush1.msra.mxu0 0.0
      %722 = vmatprep.mubr.f32.mxu0 0.0
      %723 = vmatmul.mubr.f32.gmra.mrb[0].mxu0 %v611
      %v724 = vpop.f32.mrb[0].mxu0
      %v725 = vadd.f32 %v607, %v724
      %v726 = vpop.f32.mrb[0].mxu0
      %727 = vmatprep.mubr.f32.mxu0 0.0
      %728 = vmatmul.mubr.f32.gmra.mrb[0].mxu0 %v614
      %v729 = vpop.f32.mrb[0].mxu0
      %v730 = vadd.f32 %v607, %v729
      %v731 = vpop.f32.mrb[0].mxu0
      %732 = vmatprep.mubr.f32.mxu0 0.0
      %733 = vmatmul.mubr.f32.gmra.mrb[0].mxu0 %v617
      %v734 = vpop.f32.mrb[0].mxu0
      %v735 = vadd.f32 %v607, %v734
      %v736 = vpop.f32.mrb[0].mxu0
      %737 = vmatprep.mubr.f32.mxu0 0.0
      %738 = vmatmul.mubr.f32.gmra.mrb[0].mxu0 %v620
      %v739 = vpop.f32.mrb[0].mxu0
      %v740 = vadd.f32 %v607, %v739
      %v741 = vpop.f32.mrb[0].mxu0
      %742 = vmatprep.mubr.f32.mxu0 0.0
      %743 = vmatmul.mubr.f32.gmra.mrb[0].mxu0 %v623
      %v744 = vpop.f32.mrb[0].mxu0
      %v745 = vadd.f32 %v607, %v744
      %v746 = vpop.f32.mrb[0].mxu0
      %747 = vmatprep.mubr.f32.mxu0 0.0
      %748 = vmatmul.mubr.f32.gmra.mrb[0].mxu0 %v626
      %v749 = vpop.f32.mrb[0].mxu0
      %v750 = vadd.f32 %v607, %v749
      %v751 = vpop.f32.mrb[0].mxu0
      %752 = vmatprep.mubr.f32.mxu0 0.0
      %753 = vmatmul.mubr.f32.gmra.mrb[0].mxu0 %v629
      %v754 = vpop.f32.mrb[0].mxu0
      %v755 = vadd.f32 %v607, %v754
      %v756 = vpop.f32.mrb[0].mxu0
      %757 = vmatprep.mubr.f32.mxu0 0.0
      %758 = vmatmul.mubr.f32.gmra.mrb[0].mxu0 %v632
      %v759 = vpop.f32.mrb[0].mxu0
      %v760 = vadd.f32 %v607, %v759
      %v761 = vpop.f32.mrb[0].mxu0
      %762 = vmatprep.mubr.f32.mxu0 0.0
      %763 = vmatmul.mubr.f32.gmra.mrb[0].mxu0 %v635
      %v764 = vpop.f32.mrb[0].mxu0
      %v765 = vadd.f32 %v607, %v764
      %v766 = vpop.f32.mrb[0].mxu0
      %767 = vmatprep.mubr.f32.mxu0 0.0
      %768 = vmatmul.mubr.f32.gmra.mrb[0].mxu0 %v638
      %v769 = vpop.f32.mrb[0].mxu0
      %v770 = vadd.f32 %v607, %v769
      %v771 = vpop.f32.mrb[0].mxu0
      %772 = vmatprep.mubr.f32.mxu0 0.0
      %773 = vmatmul.mubr.f32.gmra.mrb[0].mxu0 %v641
      %v774 = vpop.f32.mrb[0].mxu0
      %v775 = vadd.f32 %v607, %v774
      %v776 = vpop.f32.mrb[0].mxu0
      %777 = vmatprep.mubr.f32.mxu0 0.0
      %778 = vmatmul.mubr.f32.gmra.mrb[0].mxu0 %v644
      %v779 = vpop.f32.mrb[0].mxu0
      %v780 = vadd.f32 %v607, %v779
      %v781 = vpop.f32.mrb[0].mxu0
      %782 = vmatprep.mubr.f32.mxu0 0.0
      %783 = vmatmul.mubr.f32.gmra.mrb[0].mxu0 %v647
      %v784 = vpop.f32.mrb[0].mxu0
      %v785 = vadd.f32 %v607, %v784
      %v786 = vpop.f32.mrb[0].mxu0
      %787 = vmatprep.mubr.f32.mxu0 0.0
      %788 = vmatmul.mubr.f32.gmra.mrb[0].mxu0 %v650
      %v789 = vpop.f32.mrb[0].mxu0
      %v790 = vadd.f32 %v607, %v789
      %v791 = vpop.f32.mrb[0].mxu0
      %792 = vmatprep.mubr.f32.mxu0 0.0
      %793 = vmatmul.mubr.f32.gmra.mrb[0].mxu0 %v653
      %v794 = vpop.f32.mrb[0].mxu0
      %v795 = vadd.f32 %v607, %v794
      %v796 = vpop.f32.mrb[0].mxu0
      %797 = vmatprep.mubr.f32.mxu0 0.0
      %798 = vmatmul.mubr.f32.gmra.mrb[0].mxu0 %v656
      %v799 = vpop.f32.mrb[0].mxu0
      %v800 = vadd.f32 %v607, %v799
      %v801 = vpop.f32.mrb[0].mxu0
      %802 = vdwg.mxu0
      %v803 = vld [vmem:[%s5] sm:$0xff]
      %v804 = vld [vmem:[%s6] sm:$0x1]
      %v806 = vlaneseq
      %v807 = vshrl.u32 %v806, 7
      %v808 = vsub.s32 0, %v807
      %v809 = vrot.slane %v804, %v808
      %vm811 = vcmask 64512
      %v813 = vsel %vm811, %v725, 0
      %v816 = vsel %vm811, %v730, 0
      %v819 = vsel %vm811, %v735, 0
      %v822 = vsel %vm811, %v740, 0
      %v825 = vsel %vm811, %v745, 0
      %v828 = vsel %vm811, %v750, 0
      %v831 = vsel %vm811, %v755, 0
      %v834 = vsel %vm811, %v760, 0
      %v837 = vsel %vm811, %v765, 0
      %v840 = vsel %vm811, %v770, 0
      %v843 = vsel %vm811, %v775, 0
      %v846 = vsel %vm811, %v780, 0
      %v849 = vsel %vm811, %v785, 0
      %v852 = vsel %vm811, %v790, 0
      %v855 = vsel %vm811, %v795, 0
      %v858 = vsel %vm811, %v800, 0
      %860 = vmatprep.subr.mxu0 0.0
      %861 = vmatpush1.msra.mxu0 %v803
      %862 = vmatprep.subr.mxu0 0.0
      %863 = vmatpush1.msra.mxu0 0.0
      %864 = vmatprep.subr.mxu0 0.0
      %865 = vmatpush1.msra.mxu0 0.0
      %866 = vmatprep.subr.mxu0 0.0
      %867 = vmatpush1.msra.mxu0 0.0
      %868 = vmatprep.subr.mxu0 0.0
      %869 = vmatpush1.msra.mxu0 0.0
      %870 = vmatprep.subr.mxu0 0.0
      %871 = vmatpush1.msra.mxu0 0.0
      %872 = vmatprep.subr.mxu0 0.0
      %873 = vmatpush1.msra.mxu0 0.0
      %874 = vmatprep.subr.mxu0 0.0
      %875 = vmatpush1.msra.mxu0 0.0
      %876 = vmatprep.subr.mxu0 0.0
      %877 = vmatpush1.msra.mxu0 0.0
      %878 = vmatprep.subr.mxu0 0.0
      %879 = vmatpush1.msra.mxu0 0.0
      %880 = vmatprep.subr.mxu0 0.0
      %881 = vmatpush1.msra.mxu0 0.0
      %882 = vmatprep.subr.mxu0 0.0
      %883 = vmatpush1.msra.mxu0 0.0
      %884 = vmatprep.subr.mxu0 0.0
      %885 = vmatpush1.msra.mxu0 0.0
      %886 = vmatprep.subr.mxu0 0.0
      %887 = vmatpush1.msra.mxu0 0.0
      %888 = vmatprep.subr.mxu0 0.0
      %889 = vmatpush1.msra.mxu0 0.0
      %890 = vmatprep.subr.mxu0 0.0
      %891 = vmatpush1.msra.mxu0 0.0
      %892 = vmatprep.subr.mxu0 0.0
      %893 = vmatpush1.msra.mxu0 0.0
      %894 = vmatprep.subr.mxu0 0.0
      %895 = vmatpush1.msra.mxu0 0.0
      %896 = vmatprep.subr.mxu0 0.0
      %897 = vmatpush1.msra.mxu0 0.0
      %898 = vmatprep.subr.mxu0 0.0
      %899 = vmatpush1.msra.mxu0 0.0
      %900 = vmatprep.subr.mxu0 0.0
      %901 = vmatpush1.msra.mxu0 0.0
      %902 = vmatprep.subr.mxu0 0.0
      %903 = vmatpush1.msra.mxu0 0.0
      %904 = vmatprep.subr.mxu0 0.0
      %905 = vmatpush1.msra.mxu0 0.0
      %906 = vmatprep.subr.mxu0 0.0
      %907 = vmatpush1.msra.mxu0 0.0
      %908 = vmatprep.subr.mxu0 0.0
      %909 = vmatpush1.msra.mxu0 0.0
      %910 = vmatprep.subr.mxu0 0.0
      %911 = vmatpush1.msra.mxu0 0.0
      %912 = vmatprep.subr.mxu0 0.0
      %913 = vmatpush1.msra.mxu0 0.0
      %914 = vmatprep.subr.mxu0 0.0
      %915 = vmatpush1.msra.mxu0 0.0
      %916 = vmatprep.subr.mxu0 0.0
      %917 = vmatpush1.msra.mxu0 0.0
      %918 = vmatprep.subr.mxu0 0.0
      %919 = vmatpush1.msra.mxu0 0.0
      %920 = vmatprep.subr.mxu0 0.0
      %921 = vmatpush1.msra.mxu0 0.0
      %922 = vmatprep.subr.mxu0 0.0
      %923 = vmatpush1.msra.mxu0 0.0
      %924 = vmatprep.mubr.f32.mxu0 0.0
      %925 = vmatmul.mubr.f32.gmra.mrb[0].mxu0 %v813
      %v926 = vpop.f32.mrb[0].mxu0
      %v927 = vadd.f32 %v809, %v926
      %v928 = vpop.f32.mrb[0].mxu0
      %929 = vmatprep.mubr.f32.mxu0 0.0
      %930 = vmatmul.mubr.f32.gmra.mrb[0].mxu0 %v816
      %v931 = vpop.f32.mrb[0].mxu0
      %v932 = vadd.f32 %v809, %v931
      %v933 = vpop.f32.mrb[0].mxu0
      %934 = vmatprep.mubr.f32.mxu0 0.0
      %935 = vmatmul.mubr.f32.gmra.mrb[0].mxu0 %v819
      %v936 = vpop.f32.mrb[0].mxu0
      %v937 = vadd.f32 %v809, %v936
      %v938 = vpop.f32.mrb[0].mxu0
      %939 = vmatprep.mubr.f32.mxu0 0.0
      %940 = vmatmul.mubr.f32.gmra.mrb[0].mxu0 %v822
      %v941 = vpop.f32.mrb[0].mxu0
      %v942 = vadd.f32 %v809, %v941
      %v943 = vpop.f32.mrb[0].mxu0
      %944 = vmatprep.mubr.f32.mxu0 0.0
      %945 = vmatmul.mubr.f32.gmra.mrb[0].mxu0 %v825
      %v946 = vpop.f32.mrb[0].mxu0
      %v947 = vadd.f32 %v809, %v946
      %v948 = vpop.f32.mrb[0].mxu0
      %949 = vmatprep.mubr.f32.mxu0 0.0
      %950 = vmatmul.mubr.f32.gmra.mrb[0].mxu0 %v828
      %v951 = vpop.f32.mrb[0].mxu0
      %v952 = vadd.f32 %v809, %v951
      %v953 = vpop.f32.mrb[0].mxu0
      %954 = vmatprep.mubr.f32.mxu0 0.0
      %955 = vmatmul.mubr.f32.gmra.mrb[0].mxu0 %v831
      %v956 = vpop.f32.mrb[0].mxu0
      %v957 = vadd.f32 %v809, %v956
      %v958 = vpop.f32.mrb[0].mxu0
      %959 = vmatprep.mubr.f32.mxu0 0.0
      %960 = vmatmul.mubr.f32.gmra.mrb[0].mxu0 %v834
      %v961 = vpop.f32.mrb[0].mxu0
      %v962 = vadd.f32 %v809, %v961
      %v963 = vpop.f32.mrb[0].mxu0
      %964 = vmatprep.mubr.f32.mxu0 0.0
      %965 = vmatmul.mubr.f32.gmra.mrb[0].mxu0 %v837
      %v966 = vpop.f32.mrb[0].mxu0
      %v967 = vadd.f32 %v809, %v966
      %v968 = vpop.f32.mrb[0].mxu0
      %969 = vmatprep.mubr.f32.mxu0 0.0
      %970 = vmatmul.mubr.f32.gmra.mrb[0].mxu0 %v840
      %v971 = vpop.f32.mrb[0].mxu0
      %v972 = vadd.f32 %v809, %v971
      %v973 = vpop.f32.mrb[0].mxu0
      %974 = vmatprep.mubr.f32.mxu0 0.0
      %975 = vmatmul.mubr.f32.gmra.mrb[0].mxu0 %v843
      %v976 = vpop.f32.mrb[0].mxu0
      %v977 = vadd.f32 %v809, %v976
      %v978 = vpop.f32.mrb[0].mxu0
      %979 = vmatprep.mubr.f32.mxu0 0.0
      %980 = vmatmul.mubr.f32.gmra.mrb[0].mxu0 %v846
      %v981 = vpop.f32.mrb[0].mxu0
      %v982 = vadd.f32 %v809, %v981
      %v983 = vpop.f32.mrb[0].mxu0
      %984 = vmatprep.mubr.f32.mxu0 0.0
      %985 = vmatmul.mubr.f32.gmra.mrb[0].mxu0 %v849
      %v986 = vpop.f32.mrb[0].mxu0
      %v987 = vadd.f32 %v809, %v986
      %v988 = vpop.f32.mrb[0].mxu0
      %989 = vmatprep.mubr.f32.mxu0 0.0
      %990 = vmatmul.mubr.f32.gmra.mrb[0].mxu0 %v852
      %v991 = vpop.f32.mrb[0].mxu0
      %v992 = vadd.f32 %v809, %v991
      %v993 = vpop.f32.mrb[0].mxu0
      %994 = vmatprep.mubr.f32.mxu0 0.0
      %995 = vmatmul.mubr.f32.gmra.mrb[0].mxu0 %v855
      %v996 = vpop.f32.mrb[0].mxu0
      %v997 = vadd.f32 %v809, %v996
      %v998 = vpop.f32.mrb[0].mxu0
      %999 = vmatprep.mubr.f32.mxu0 0.0
      %1000 = vmatmul.mubr.f32.gmra.mrb[0].mxu0 %v858
      %v1001 = vpop.f32.mrb[0].mxu0
      %v1002 = vadd.f32 %v809, %v1001
      %v1003 = vpop.f32.mrb[0].mxu0
      %1004 = vdwg.mxu0
      %v1005 = vmax.f32 %v927, 0.0
      %v1006 = vmax.f32 %v932, 0.0
      %v1007 = vmax.f32 %v937, 0.0
      %v1008 = vmax.f32 %v942, 0.0
      %v1009 = vmax.f32 %v947, 0.0
      %v1010 = vmax.f32 %v952, 0.0
      %v1011 = vmax.f32 %v957, 0.0
      %v1012 = vmax.f32 %v962, 0.0
      %v1013 = vmax.f32 %v967, 0.0
      %v1014 = vmax.f32 %v972, 0.0
      %v1015 = vmax.f32 %v977, 0.0
      %v1016 = vmax.f32 %v982, 0.0
      %v1017 = vmax.f32 %v987, 0.0
      %v1018 = vmax.f32 %v992, 0.0
      %v1019 = vmax.f32 %v997, 0.0
      %v1020 = vmax.f32 %v1002, 0.0
      %v1021 = vld [vmem:[%s7] sm:$0xff]
      %v1022 = vld [vmem:[%s7 + $0x8] sm:$0xff]
      %v1023 = vld [vmem:[%s7 + $0x10] sm:$0xff]
      %v1024 = vld [vmem:[%s7 + $0x18] sm:$0xff]
      %v1025 = vld [vmem:[%s8] sm:$0xff]
      %v1026 = vld [vmem:[%s8 + $0x8] sm:$0xff]
      %v1027 = vld [vmem:[%s8 + $0x10] sm:$0xff]
      %v1028 = vld [vmem:[%s8 + $0x18] sm:$0xff]
      %v1030 = vsel %vm609, %v1005, 0
      %v1033 = vsel %vm609, %v1006, 0
      %v1036 = vsel %vm609, %v1007, 0
      %v1039 = vsel %vm609, %v1008, 0
      %v1042 = vsel %vm609, %v1009, 0
      %v1045 = vsel %vm609, %v1010, 0
      %v1048 = vsel %vm609, %v1011, 0
      %v1051 = vsel %vm609, %v1012, 0
      %v1054 = vsel %vm609, %v1013, 0
      %v1057 = vsel %vm609, %v1014, 0
      %v1060 = vsel %vm609, %v1015, 0
      %v1063 = vsel %vm609, %v1016, 0
      %v1066 = vsel %vm609, %v1017, 0
      %v1069 = vsel %vm609, %v1018, 0
      %v1072 = vsel %vm609, %v1019, 0
      %v1075 = vsel %vm609, %v1020, 0
      %1077 = vmatprep.subr.mxu0 0.0
      %1078 = vmatpush1.msra.mxu0 %v1025
      %1079 = vmatprep.subr.mxu0 0.0
      %1080 = vmatpush1.msra.mxu0 %v1026
      %1081 = vmatprep.subr.mxu0 0.0
      %1082 = vmatpush1.msra.mxu0 %v1027
      %1083 = vmatprep.subr.mxu0 0.0
      %1084 = vmatpush1.msra.mxu0 %v1028
      %1085 = vmatprep.subr.mxu0 0.0
      %1086 = vmatpush1.msra.mxu0 0.0
      %1087 = vmatprep.subr.mxu0 0.0
      %1088 = vmatpush1.msra.mxu0 0.0
      %1089 = vmatprep.subr.mxu0 0.0
      %1090 = vmatpush1.msra.mxu0 0.0
      %1091 = vmatprep.subr.mxu0 0.0
      %1092 = vmatpush1.msra.mxu0 0.0
      %1093 = vmatprep.subr.mxu0 0.0
      %1094 = vmatpush1.msra.mxu0 0.0
      %1095 = vmatprep.subr.mxu0 0.0
      %1096 = vmatpush1.msra.mxu0 0.0
      %1097 = vmatprep.subr.mxu0 0.0
      %1098 = vmatpush1.msra.mxu0 0.0
      %1099 = vmatprep.subr.mxu0 0.0
      %1100 = vmatpush1.msra.mxu0 0.0
      %1101 = vmatprep.subr.mxu0 0.0
      %1102 = vmatpush1.msra.mxu0 0.0
      %1103 = vmatprep.subr.mxu0 0.0
      %1104 = vmatpush1.msra.mxu0 0.0
      %1105 = vmatprep.subr.mxu0 0.0
      %1106 = vmatpush1.msra.mxu0 0.0
      %1107 = vmatprep.subr.mxu0 0.0
      %1108 = vmatpush1.msra.mxu0 0.0
      %1109 = vmatprep.subr.mxu0 0.0
      %1110 = vmatpush1.msra.mxu0 0.0
      %1111 = vmatprep.subr.mxu0 0.0
      %1112 = vmatpush1.msra.mxu0 0.0
      %1113 = vmatprep.subr.mxu0 0.0
      %1114 = vmatpush1.msra.mxu0 0.0
      %1115 = vmatprep.subr.mxu0 0.0
      %1116 = vmatpush1.msra.mxu0 0.0
      %1117 = vmatprep.subr.mxu0 0.0
      %1118 = vmatpush1.msra.mxu0 0.0
      %1119 = vmatprep.subr.mxu0 0.0
      %1120 = vmatpush1.msra.mxu0 0.0
      %1121 = vmatprep.subr.mxu0 0.0
      %1122 = vmatpush1.msra.mxu0 0.0
      %1123 = vmatprep.subr.mxu0 0.0
      %1124 = vmatpush1.msra.mxu0 0.0
      %1125 = vmatprep.subr.mxu0 0.0
      %1126 = vmatpush1.msra.mxu0 0.0
      %1127 = vmatprep.subr.mxu0 0.0
      %1128 = vmatpush1.msra.mxu0 0.0
      %1129 = vmatprep.subr.mxu0 0.0
      %1130 = vmatpush1.msra.mxu0 0.0
      %1131 = vmatprep.subr.mxu0 0.0
      %1132 = vmatpush1.msra.mxu0 0.0
      %1133 = vmatprep.subr.mxu0 0.0
      %1134 = vmatpush1.msra.mxu0 0.0
      %1135 = vmatprep.subr.mxu0 0.0
      %1136 = vmatpush1.msra.mxu0 0.0
      %1137 = vmatprep.subr.mxu0 0.0
      %1138 = vmatpush1.msra.mxu0 0.0
      %1139 = vmatprep.subr.mxu0 0.0
      %1140 = vmatpush1.msra.mxu0 0.0
      %1141 = vmatprep.mubr.f32.mxu0 0.0
      %1142 = vmatmul.mubr.f32.gmra.mrb[0].mxu0 %v1030
      %v1143 = vpop.f32.mrb[0].mxu0
      %v1144 = vadd.f32 0.0, %v1143
      %v1145 = vpop.f32.mrb[0].mxu0
      %1146 = vmatprep.mubr.f32.mxu0 0.0
      %1147 = vmatmul.mubr.f32.gmra.mrb[0].mxu0 %v1033
      %v1148 = vpop.f32.mrb[0].mxu0
      %v1149 = vadd.f32 0.0, %v1148
      %v1150 = vpop.f32.mrb[0].mxu0
      %1151 = vmatprep.mubr.f32.mxu0 0.0
      %1152 = vmatmul.mubr.f32.gmra.mrb[0].mxu0 %v1036
      %v1153 = vpop.f32.mrb[0].mxu0
      %v1154 = vadd.f32 0.0, %v1153
      %v1155 = vpop.f32.mrb[0].mxu0
      %1156 = vmatprep.mubr.f32.mxu0 0.0
      %1157 = vmatmul.mubr.f32.gmra.mrb[0].mxu0 %v1039
      %v1158 = vpop.f32.mrb[0].mxu0
      %v1159 = vadd.f32 0.0, %v1158
      %v1160 = vpop.f32.mrb[0].mxu0
      %1161 = vmatprep.mubr.f32.mxu0 0.0
      %1162 = vmatmul.mubr.f32.gmra.mrb[0].mxu0 %v1042
      %v1163 = vpop.f32.mrb[0].mxu0
      %v1164 = vadd.f32 0.0, %v1163
      %v1165 = vpop.f32.mrb[0].mxu0
      %1166 = vmatprep.mubr.f32.mxu0 0.0
      %1167 = vmatmul.mubr.f32.gmra.mrb[0].mxu0 %v1045
      %v1168 = vpop.f32.mrb[0].mxu0
      %v1169 = vadd.f32 0.0, %v1168
      %v1170 = vpop.f32.mrb[0].mxu0
      %1171 = vmatprep.mubr.f32.mxu0 0.0
      %1172 = vmatmul.mubr.f32.gmra.mrb[0].mxu0 %v1048
      %v1173 = vpop.f32.mrb[0].mxu0
      %v1174 = vadd.f32 0.0, %v1173
      %v1175 = vpop.f32.mrb[0].mxu0
      %1176 = vmatprep.mubr.f32.mxu0 0.0
      %1177 = vmatmul.mubr.f32.gmra.mrb[0].mxu0 %v1051
      %v1178 = vpop.f32.mrb[0].mxu0
      %v1179 = vadd.f32 0.0, %v1178
      %v1180 = vpop.f32.mrb[0].mxu0
      %1181 = vmatprep.mubr.f32.mxu0 0.0
      %1182 = vmatmul.mubr.f32.gmra.mrb[0].mxu0 %v1054
      %v1183 = vpop.f32.mrb[0].mxu0
      %v1184 = vadd.f32 0.0, %v1183
      %v1185 = vpop.f32.mrb[0].mxu0
      %1186 = vmatprep.mubr.f32.mxu0 0.0
      %1187 = vmatmul.mubr.f32.gmra.mrb[0].mxu0 %v1057
      %v1188 = vpop.f32.mrb[0].mxu0
      %v1189 = vadd.f32 0.0, %v1188
      %v1190 = vpop.f32.mrb[0].mxu0
      %1191 = vmatprep.mubr.f32.mxu0 0.0
      %1192 = vmatmul.mubr.f32.gmra.mrb[0].mxu0 %v1060
      %v1193 = vpop.f32.mrb[0].mxu0
      %v1194 = vadd.f32 0.0, %v1193
      %v1195 = vpop.f32.mrb[0].mxu0
      %1196 = vmatprep.mubr.f32.mxu0 0.0
      %1197 = vmatmul.mubr.f32.gmra.mrb[0].mxu0 %v1063
      %v1198 = vpop.f32.mrb[0].mxu0
      %v1199 = vadd.f32 0.0, %v1198
      %v1200 = vpop.f32.mrb[0].mxu0
      %1201 = vmatprep.mubr.f32.mxu0 0.0
      %1202 = vmatmul.mubr.f32.gmra.mrb[0].mxu0 %v1066
      %v1203 = vpop.f32.mrb[0].mxu0
      %v1204 = vadd.f32 0.0, %v1203
      %v1205 = vpop.f32.mrb[0].mxu0
      %1206 = vmatprep.mubr.f32.mxu0 0.0
      %1207 = vmatmul.mubr.f32.gmra.mrb[0].mxu0 %v1069
      %v1208 = vpop.f32.mrb[0].mxu0
      %v1209 = vadd.f32 0.0, %v1208
      %v1210 = vpop.f32.mrb[0].mxu0
      %1211 = vmatprep.mubr.f32.mxu0 0.0
      %1212 = vmatmul.mubr.f32.gmra.mrb[0].mxu0 %v1072
      %v1213 = vpop.f32.mrb[0].mxu0
      %v1214 = vadd.f32 0.0, %v1213
      %v1215 = vpop.f32.mrb[0].mxu0
      %1216 = vmatprep.mubr.f32.mxu0 0.0
      %1217 = vmatmul.mubr.f32.gmra.mrb[0].mxu0 %v1075
      %v1218 = vpop.f32.mrb[0].mxu0
      %v1219 = vadd.f32 0.0, %v1218
      %v1220 = vpop.f32.mrb[0].mxu0
      %1221 = vdwg.mxu0
      %1222 = vmatprep.subr.mxu0 0.0
      %1223 = vmatpush1.msra.mxu0 %v1021
      %1224 = vmatprep.subr.mxu0 0.0
      %1225 = vmatpush1.msra.mxu0 %v1022
      %1226 = vmatprep.subr.mxu0 0.0
      %1227 = vmatpush1.msra.mxu0 %v1023
      %1228 = vmatprep.subr.mxu0 0.0
      %1229 = vmatpush1.msra.mxu0 %v1024
      %1230 = vmatprep.subr.mxu0 0.0
      %1231 = vmatpush1.msra.mxu0 0.0
      %1232 = vmatprep.subr.mxu0 0.0
      %1233 = vmatpush1.msra.mxu0 0.0
      %1234 = vmatprep.subr.mxu0 0.0
      %1235 = vmatpush1.msra.mxu0 0.0
      %1236 = vmatprep.subr.mxu0 0.0
      %1237 = vmatpush1.msra.mxu0 0.0
      %1238 = vmatprep.subr.mxu0 0.0
      %1239 = vmatpush1.msra.mxu0 0.0
      %1240 = vmatprep.subr.mxu0 0.0
      %1241 = vmatpush1.msra.mxu0 0.0
      %1242 = vmatprep.subr.mxu0 0.0
      %1243 = vmatpush1.msra.mxu0 0.0
      %1244 = vmatprep.subr.mxu0 0.0
      %1245 = vmatpush1.msra.mxu0 0.0
      %1246 = vmatprep.subr.mxu0 0.0
      %1247 = vmatpush1.msra.mxu0 0.0
      %1248 = vmatprep.subr.mxu0 0.0
      %1249 = vmatpush1.msra.mxu0 0.0
      %1250 = vmatprep.subr.mxu0 0.0
      %1251 = vmatpush1.msra.mxu0 0.0
      %1252 = vmatprep.subr.mxu0 0.0
      %1253 = vmatpush1.msra.mxu0 0.0
      %1254 = vmatprep.subr.mxu0 0.0
      %1255 = vmatpush1.msra.mxu0 0.0
      %1256 = vmatprep.subr.mxu0 0.0
      %1257 = vmatpush1.msra.mxu0 0.0
      %1258 = vmatprep.subr.mxu0 0.0
      %1259 = vmatpush1.msra.mxu0 0.0
      %1260 = vmatprep.subr.mxu0 0.0
      %1261 = vmatpush1.msra.mxu0 0.0
      %1262 = vmatprep.subr.mxu0 0.0
      %1263 = vmatpush1.msra.mxu0 0.0
      %1264 = vmatprep.subr.mxu0 0.0
      %1265 = vmatpush1.msra.mxu0 0.0
      %1266 = vmatprep.subr.mxu0 0.0
      %1267 = vmatpush1.msra.mxu0 0.0
      %1268 = vmatprep.subr.mxu0 0.0
      %1269 = vmatpush1.msra.mxu0 0.0
      %1270 = vmatprep.subr.mxu0 0.0
      %1271 = vmatpush1.msra.mxu0 0.0
      %1272 = vmatprep.subr.mxu0 0.0
      %1273 = vmatpush1.msra.mxu0 0.0
      %1274 = vmatprep.subr.mxu0 0.0
      %1275 = vmatpush1.msra.mxu0 0.0
      %1276 = vmatprep.subr.mxu0 0.0
      %1277 = vmatpush1.msra.mxu0 0.0
      %1278 = vmatprep.subr.mxu0 0.0
      %1279 = vmatpush1.msra.mxu0 0.0
      %1280 = vmatprep.subr.mxu0 0.0
      %1281 = vmatpush1.msra.mxu0 0.0
      %1282 = vmatprep.subr.mxu0 0.0
      %1283 = vmatpush1.msra.mxu0 0.0
      %1284 = vmatprep.subr.mxu0 0.0
      %1285 = vmatpush1.msra.mxu0 0.0
      %1286 = vmatprep.mubr.f32.mxu0 0.0
      %1287 = vmatmul.mubr.f32.gmra.mrb[0].mxu0 %v611
      %v1288 = vpop.f32.mrb[0].mxu0
      %v1289 = vadd.f32 %v1144, %v1288
      %v1290 = vpop.f32.mrb[0].mxu0
      %1291 = vmatprep.mubr.f32.mxu0 0.0
      %1292 = vmatmul.mubr.f32.gmra.mrb[0].mxu0 %v614
      %v1293 = vpop.f32.mrb[0].mxu0
      %v1294 = vadd.f32 %v1149, %v1293
      %v1295 = vpop.f32.mrb[0].mxu0
      %1296 = vmatprep.mubr.f32.mxu0 0.0
      %1297 = vmatmul.mubr.f32.gmra.mrb[0].mxu0 %v617
      %v1298 = vpop.f32.mrb[0].mxu0
      %v1299 = vadd.f32 %v1154, %v1298
      %v1300 = vpop.f32.mrb[0].mxu0
      %1301 = vmatprep.mubr.f32.mxu0 0.0
      %1302 = vmatmul.mubr.f32.gmra.mrb[0].mxu0 %v620
      %v1303 = vpop.f32.mrb[0].mxu0
      %v1304 = vadd.f32 %v1159, %v1303
      %v1305 = vpop.f32.mrb[0].mxu0
      %1306 = vmatprep.mubr.f32.mxu0 0.0
      %1307 = vmatmul.mubr.f32.gmra.mrb[0].mxu0 %v623
      %v1308 = vpop.f32.mrb[0].mxu0
      %v1309 = vadd.f32 %v1164, %v1308
      %v1310 = vpop.f32.mrb[0].mxu0
      %1311 = vmatprep.mubr.f32.mxu0 0.0
      %1312 = vmatmul.mubr.f32.gmra.mrb[0].mxu0 %v626
      %v1313 = vpop.f32.mrb[0].mxu0
      %v1314 = vadd.f32 %v1169, %v1313
      %v1315 = vpop.f32.mrb[0].mxu0
      %1316 = vmatprep.mubr.f32.mxu0 0.0
      %1317 = vmatmul.mubr.f32.gmra.mrb[0].mxu0 %v629
      %v1318 = vpop.f32.mrb[0].mxu0
      %v1319 = vadd.f32 %v1174, %v1318
      %v1320 = vpop.f32.mrb[0].mxu0
      %1321 = vmatprep.mubr.f32.mxu0 0.0
      %1322 = vmatmul.mubr.f32.gmra.mrb[0].mxu0 %v632
      %v1323 = vpop.f32.mrb[0].mxu0
      %v1324 = vadd.f32 %v1179, %v1323
      %v1325 = vpop.f32.mrb[0].mxu0
      %1326 = vmatprep.mubr.f32.mxu0 0.0
      %1327 = vmatmul.mubr.f32.gmra.mrb[0].mxu0 %v635
      %v1328 = vpop.f32.mrb[0].mxu0
      %v1329 = vadd.f32 %v1184, %v1328
      %v1330 = vpop.f32.mrb[0].mxu0
      %1331 = vmatprep.mubr.f32.mxu0 0.0
      %1332 = vmatmul.mubr.f32.gmra.mrb[0].mxu0 %v638
      %v1333 = vpop.f32.mrb[0].mxu0
      %v1334 = vadd.f32 %v1189, %v1333
      %v1335 = vpop.f32.mrb[0].mxu0
      %1336 = vmatprep.mubr.f32.mxu0 0.0
      %1337 = vmatmul.mubr.f32.gmra.mrb[0].mxu0 %v641
      %v1338 = vpop.f32.mrb[0].mxu0
      %v1339 = vadd.f32 %v1194, %v1338
      %v1340 = vpop.f32.mrb[0].mxu0
      %1341 = vmatprep.mubr.f32.mxu0 0.0
      %1342 = vmatmul.mubr.f32.gmra.mrb[0].mxu0 %v644
      %v1343 = vpop.f32.mrb[0].mxu0
      %v1344 = vadd.f32 %v1199, %v1343
      %v1345 = vpop.f32.mrb[0].mxu0
      %1346 = vmatprep.mubr.f32.mxu0 0.0
      %1347 = vmatmul.mubr.f32.gmra.mrb[0].mxu0 %v647
      %v1348 = vpop.f32.mrb[0].mxu0
      %v1349 = vadd.f32 %v1204, %v1348
      %v1350 = vpop.f32.mrb[0].mxu0
      %1351 = vmatprep.mubr.f32.mxu0 0.0
      %1352 = vmatmul.mubr.f32.gmra.mrb[0].mxu0 %v650
      %v1353 = vpop.f32.mrb[0].mxu0
      %v1354 = vadd.f32 %v1209, %v1353
      %v1355 = vpop.f32.mrb[0].mxu0
      %1356 = vmatprep.mubr.f32.mxu0 0.0
      %1357 = vmatmul.mubr.f32.gmra.mrb[0].mxu0 %v653
      %v1358 = vpop.f32.mrb[0].mxu0
      %v1359 = vadd.f32 %v1214, %v1358
      %v1360 = vpop.f32.mrb[0].mxu0
      %1361 = vmatprep.mubr.f32.mxu0 0.0
      %1362 = vmatmul.mubr.f32.gmra.mrb[0].mxu0 %v656
      %v1363 = vpop.f32.mrb[0].mxu0
      %v1364 = vadd.f32 %v1219, %v1363
      %v1365 = vpop.f32.mrb[0].mxu0
      %1366 = vdwg.mxu0
      %v1367 = vld [vmem:[%s9] sm:$0x1]
      %v1369 = vlaneseq
      %v1370 = vshrl.u32 %v1369, 7
      %v1371 = vsub.s32 0, %v1370
      %v1372 = vrot.slane %v1367, %v1371
      %v1374 = vadd.f32 %v1289, %v1372
      %v1375 = vadd.f32 %v1294, %v1372
      %v1376 = vadd.f32 %v1299, %v1372
      %v1377 = vadd.f32 %v1304, %v1372
      %v1378 = vadd.f32 %v1309, %v1372
      %v1379 = vadd.f32 %v1314, %v1372
      %v1380 = vadd.f32 %v1319, %v1372
      %v1381 = vadd.f32 %v1324, %v1372
      %v1382 = vadd.f32 %v1329, %v1372
      %v1383 = vadd.f32 %v1334, %v1372
      %v1384 = vadd.f32 %v1339, %v1372
      %v1385 = vadd.f32 %v1344, %v1372
      %v1386 = vadd.f32 %v1349, %v1372
      %v1387 = vadd.f32 %v1354, %v1372
      %v1388 = vadd.f32 %v1359, %v1372
      %v1389 = vadd.f32 %v1364, %v1372
      %v1390 = vlaneseq
      %v1391 = vand.u32 %v1390, 127
      %vm1392 = vcmp.ge.s32.totalorder %v1391, 24
      %vm1393 = vcmp.lt.s32.totalorder %v1391, 48
      %vm1394 = vmand %vm1392, %vm1393
      %vm1395 = vcmp.gt.f32.partialorder %v1374, 20.0
      %vm1396 = vcmp.gt.f32.partialorder %v1375, 20.0
      %vm1397 = vcmp.gt.f32.partialorder %v1376, 20.0
      %vm1398 = vcmp.gt.f32.partialorder %v1377, 20.0
      %vm1399 = vcmp.gt.f32.partialorder %v1378, 20.0
      %vm1400 = vcmp.gt.f32.partialorder %v1379, 20.0
      %vm1401 = vcmp.gt.f32.partialorder %v1380, 20.0
      %vm1402 = vcmp.gt.f32.partialorder %v1381, 20.0
      %vm1403 = vcmp.gt.f32.partialorder %v1382, 20.0
      %vm1404 = vcmp.gt.f32.partialorder %v1383, 20.0
      %vm1405 = vcmp.gt.f32.partialorder %v1384, 20.0
      %vm1406 = vcmp.gt.f32.partialorder %v1385, 20.0
      %vm1407 = vcmp.gt.f32.partialorder %v1386, 20.0
      %vm1408 = vcmp.gt.f32.partialorder %v1387, 20.0
      %vm1409 = vcmp.gt.f32.partialorder %v1388, 20.0
      %vm1410 = vcmp.gt.f32.partialorder %v1389, 20.0
      %v1411 = vmin.f32 %v1374, 20.0
      %v1412 = vmin.f32 %v1375, 20.0
      %v1413 = vmin.f32 %v1376, 20.0
      %v1414 = vmin.f32 %v1377, 20.0
      %v1415 = vmin.f32 %v1378, 20.0
      %v1416 = vmin.f32 %v1379, 20.0
      %v1417 = vmin.f32 %v1380, 20.0
      %v1418 = vmin.f32 %v1381, 20.0
      %v1419 = vmin.f32 %v1382, 20.0
      %v1420 = vmin.f32 %v1383, 20.0
      %v1421 = vmin.f32 %v1384, 20.0
      %v1422 = vmin.f32 %v1385, 20.0
      %v1423 = vmin.f32 %v1386, 20.0
      %v1424 = vmin.f32 %v1387, 20.0
      %v1425 = vmin.f32 %v1388, 20.0
      %v1426 = vmin.f32 %v1389, 20.0
      %v1427 = vmul.f32 %v1411, 1.442695
      %v1428 = vpow.pop %v1427
      %v1429 = vmul.f32 %v1412, 1.442695
      %v1430 = vpow.pop %v1429
      %v1431 = vmul.f32 %v1413, 1.442695
      %v1432 = vpow.pop %v1431
      %v1433 = vmul.f32 %v1414, 1.442695
      %v1434 = vpow.pop %v1433
      %v1435 = vmul.f32 %v1415, 1.442695
      %v1436 = vpow.pop %v1435
      %v1437 = vmul.f32 %v1416, 1.442695
      %v1438 = vpow.pop %v1437
      %v1439 = vmul.f32 %v1417, 1.442695
      %v1440 = vpow.pop %v1439
      %v1441 = vmul.f32 %v1418, 1.442695
      %v1442 = vpow.pop %v1441
      %v1443 = vmul.f32 %v1419, 1.442695
      %v1444 = vpow.pop %v1443
      %v1445 = vmul.f32 %v1420, 1.442695
      %v1446 = vpow.pop %v1445
      %v1447 = vmul.f32 %v1421, 1.442695
      %v1448 = vpow.pop %v1447
      %v1449 = vmul.f32 %v1422, 1.442695
      %v1450 = vpow.pop %v1449
      %v1451 = vmul.f32 %v1423, 1.442695
      %v1452 = vpow.pop %v1451
      %v1453 = vmul.f32 %v1424, 1.442695
      %v1454 = vpow.pop %v1453
      %v1455 = vmul.f32 %v1425, 1.442695
      %v1456 = vpow.pop %v1455
      %v1457 = vmul.f32 %v1426, 1.442695
      %v1458 = vpow.pop %v1457
      %v1459 = vadd.f32 %v1428, 1.0
      %v1460 = vlog2.pop %v1459
      %v1461 = vmul.f32 %v1460, 0.6931472
      %v1462 = vmul.f32 -0.5, %v1428
      %v1463 = vadd.f32 %v1462, 1.0
      %v1464 = vmul.f32 %v1463, %v1428
      %v1465 = vand.u32 2147483647, %v1428
      %vm1466 = vcmp.lt.f32.partialorder %v1465, 0.0004427343
      %v1467 = vsel %vm1466, %v1464, %v1461
      %v1468 = vadd.f32 %v1430, 1.0
      %v1469 = vlog2.pop %v1468
      %v1470 = vmul.f32 %v1469, 0.6931472
      %v1471 = vmul.f32 -0.5, %v1430
      %v1472 = vadd.f32 %v1471, 1.0
      %v1473 = vmul.f32 %v1472, %v1430
      %v1474 = vand.u32 2147483647, %v1430
      %vm1475 = vcmp.lt.f32.partialorder %v1474, 0.0004427343
      %v1476 = vsel %vm1475, %v1473, %v1470
      %v1477 = vadd.f32 %v1432, 1.0
      %v1478 = vlog2.pop %v1477
      %v1479 = vmul.f32 %v1478, 0.6931472
      %v1480 = vmul.f32 -0.5, %v1432
      %v1481 = vadd.f32 %v1480, 1.0
      %v1482 = vmul.f32 %v1481, %v1432
      %v1483 = vand.u32 2147483647, %v1432
      %vm1484 = vcmp.lt.f32.partialorder %v1483, 0.0004427343
      %v1485 = vsel %vm1484, %v1482, %v1479
      %v1486 = vadd.f32 %v1434, 1.0
      %v1487 = vlog2.pop %v1486
      %v1488 = vmul.f32 %v1487, 0.6931472
      %v1489 = vmul.f32 -0.5, %v1434
      %v1490 = vadd.f32 %v1489, 1.0
      %v1491 = vmul.f32 %v1490, %v1434
      %v1492 = vand.u32 2147483647, %v1434
      %vm1493 = vcmp.lt.f32.partialorder %v1492, 0.0004427343
      %v1494 = vsel %vm1493, %v1491, %v1488
      %v1495 = vadd.f32 %v1436, 1.0
      %v1496 = vlog2.pop %v1495
      %v1497 = vmul.f32 %v1496, 0.6931472
      %v1498 = vmul.f32 -0.5, %v1436
      %v1499 = vadd.f32 %v1498, 1.0
      %v1500 = vmul.f32 %v1499, %v1436
      %v1501 = vand.u32 2147483647, %v1436
      %vm1502 = vcmp.lt.f32.partialorder %v1501, 0.0004427343
      %v1503 = vsel %vm1502, %v1500, %v1497
      %v1504 = vadd.f32 %v1438, 1.0
      %v1505 = vlog2.pop %v1504
      %v1506 = vmul.f32 %v1505, 0.6931472
      %v1507 = vmul.f32 -0.5, %v1438
      %v1508 = vadd.f32 %v1507, 1.0
      %v1509 = vmul.f32 %v1508, %v1438
      %v1510 = vand.u32 2147483647, %v1438
      %vm1511 = vcmp.lt.f32.partialorder %v1510, 0.0004427343
      %v1512 = vsel %vm1511, %v1509, %v1506
      %v1513 = vadd.f32 %v1440, 1.0
      %v1514 = vlog2.pop %v1513
      %v1515 = vmul.f32 %v1514, 0.6931472
      %v1516 = vmul.f32 -0.5, %v1440
      %v1517 = vadd.f32 %v1516, 1.0
      %v1518 = vmul.f32 %v1517, %v1440
      %v1519 = vand.u32 2147483647, %v1440
      %vm1520 = vcmp.lt.f32.partialorder %v1519, 0.0004427343
      %v1521 = vsel %vm1520, %v1518, %v1515
      %v1522 = vadd.f32 %v1442, 1.0
      %v1523 = vlog2.pop %v1522
      %v1524 = vmul.f32 %v1523, 0.6931472
      %v1525 = vmul.f32 -0.5, %v1442
      %v1526 = vadd.f32 %v1525, 1.0
      %v1527 = vmul.f32 %v1526, %v1442
      %v1528 = vand.u32 2147483647, %v1442
      %vm1529 = vcmp.lt.f32.partialorder %v1528, 0.0004427343
      %v1530 = vsel %vm1529, %v1527, %v1524
      %v1531 = vadd.f32 %v1444, 1.0
      %v1532 = vlog2.pop %v1531
      %v1533 = vmul.f32 %v1532, 0.6931472
      %v1534 = vmul.f32 -0.5, %v1444
      %v1535 = vadd.f32 %v1534, 1.0
      %v1536 = vmul.f32 %v1535, %v1444
      %v1537 = vand.u32 2147483647, %v1444
      %vm1538 = vcmp.lt.f32.partialorder %v1537, 0.0004427343
      %v1539 = vsel %vm1538, %v1536, %v1533
      %v1540 = vadd.f32 %v1446, 1.0
      %v1541 = vlog2.pop %v1540
      %v1542 = vmul.f32 %v1541, 0.6931472
      %v1543 = vmul.f32 -0.5, %v1446
      %v1544 = vadd.f32 %v1543, 1.0
      %v1545 = vmul.f32 %v1544, %v1446
      %v1546 = vand.u32 2147483647, %v1446
      %vm1547 = vcmp.lt.f32.partialorder %v1546, 0.0004427343
      %v1548 = vsel %vm1547, %v1545, %v1542
      %v1549 = vadd.f32 %v1448, 1.0
      %v1550 = vlog2.pop %v1549
      %v1551 = vmul.f32 %v1550, 0.6931472
      %v1552 = vmul.f32 -0.5, %v1448
      %v1553 = vadd.f32 %v1552, 1.0
      %v1554 = vmul.f32 %v1553, %v1448
      %v1555 = vand.u32 2147483647, %v1448
      %vm1556 = vcmp.lt.f32.partialorder %v1555, 0.0004427343
      %v1557 = vsel %vm1556, %v1554, %v1551
      %v1558 = vadd.f32 %v1450, 1.0
      %v1559 = vlog2.pop %v1558
      %v1560 = vmul.f32 %v1559, 0.6931472
      %v1561 = vmul.f32 -0.5, %v1450
      %v1562 = vadd.f32 %v1561, 1.0
      %v1563 = vmul.f32 %v1562, %v1450
      %v1564 = vand.u32 2147483647, %v1450
      %vm1565 = vcmp.lt.f32.partialorder %v1564, 0.0004427343
      %v1566 = vsel %vm1565, %v1563, %v1560
      %v1567 = vadd.f32 %v1452, 1.0
      %v1568 = vlog2.pop %v1567
      %v1569 = vmul.f32 %v1568, 0.6931472
      %v1570 = vmul.f32 -0.5, %v1452
      %v1571 = vadd.f32 %v1570, 1.0
      %v1572 = vmul.f32 %v1571, %v1452
      %v1573 = vand.u32 2147483647, %v1452
      %vm1574 = vcmp.lt.f32.partialorder %v1573, 0.0004427343
      %v1575 = vsel %vm1574, %v1572, %v1569
      %v1576 = vadd.f32 %v1454, 1.0
      %v1577 = vlog2.pop %v1576
      %v1578 = vmul.f32 %v1577, 0.6931472
      %v1579 = vmul.f32 -0.5, %v1454
      %v1580 = vadd.f32 %v1579, 1.0
      %v1581 = vmul.f32 %v1580, %v1454
      %v1582 = vand.u32 2147483647, %v1454
      %vm1583 = vcmp.lt.f32.partialorder %v1582, 0.0004427343
      %v1584 = vsel %vm1583, %v1581, %v1578
      %v1585 = vadd.f32 %v1456, 1.0
      %v1586 = vlog2.pop %v1585
      %v1587 = vmul.f32 %v1586, 0.6931472
      %v1588 = vmul.f32 -0.5, %v1456
      %v1589 = vadd.f32 %v1588, 1.0
      %v1590 = vmul.f32 %v1589, %v1456
      %v1591 = vand.u32 2147483647, %v1456
      %vm1592 = vcmp.lt.f32.partialorder %v1591, 0.0004427343
      %v1593 = vsel %vm1592, %v1590, %v1587
      %v1594 = vadd.f32 %v1458, 1.0
      %v1595 = vlog2.pop %v1594
      %v1596 = vmul.f32 %v1595, 0.6931472
      %v1597 = vmul.f32 -0.5, %v1458
      %v1598 = vadd.f32 %v1597, 1.0
      %v1599 = vmul.f32 %v1598, %v1458
      %v1600 = vand.u32 2147483647, %v1458
      %vm1601 = vcmp.lt.f32.partialorder %v1600, 0.0004427343
      %v1602 = vsel %vm1601, %v1599, %v1596
      %v1603 = vsel %vm1395, %v1374, %v1467
      %v1604 = vsel %vm1396, %v1375, %v1476
      %v1605 = vsel %vm1397, %v1376, %v1485
      %v1606 = vsel %vm1398, %v1377, %v1494
      %v1607 = vsel %vm1399, %v1378, %v1503
      %v1608 = vsel %vm1400, %v1379, %v1512
      %v1609 = vsel %vm1401, %v1380, %v1521
      %v1610 = vsel %vm1402, %v1381, %v1530
      %v1611 = vsel %vm1403, %v1382, %v1539
      %v1612 = vsel %vm1404, %v1383, %v1548
      %v1613 = vsel %vm1405, %v1384, %v1557
      %v1614 = vsel %vm1406, %v1385, %v1566
      %v1615 = vsel %vm1407, %v1386, %v1575
      %v1616 = vsel %vm1408, %v1387, %v1584
      %v1617 = vsel %vm1409, %v1388, %v1593
      %v1618 = vsel %vm1410, %v1389, %v1602
      %v1619 = vadd.f32 %v1603, 0.001
      %v1620 = vadd.f32 %v1604, 0.001
      %v1621 = vadd.f32 %v1605, 0.001
      %v1622 = vadd.f32 %v1606, 0.001
      %v1623 = vadd.f32 %v1607, 0.001
      %v1624 = vadd.f32 %v1608, 0.001
      %v1625 = vadd.f32 %v1609, 0.001
      %v1626 = vadd.f32 %v1610, 0.001
      %v1627 = vadd.f32 %v1611, 0.001
      %v1628 = vadd.f32 %v1612, 0.001
      %v1629 = vadd.f32 %v1613, 0.001
      %v1630 = vadd.f32 %v1614, 0.001
      %v1631 = vadd.f32 %v1615, 0.001
      %v1632 = vadd.f32 %v1616, 0.001
      %v1633 = vadd.f32 %v1617, 0.001
      %v1634 = vadd.f32 %v1618, 0.001
      %v1635 = vsel %vm1394, 1, 0
      %vm1636 = vcmp.eq.s32.totalorder %v1635, 1
      %v1637 = vsel %vm1636, %v1619, %v1374
      %v1638 = vsel %vm1636, %v1620, %v1375
      %v1639 = vsel %vm1636, %v1621, %v1376
      %v1640 = vsel %vm1636, %v1622, %v1377
      %v1641 = vsel %vm1636, %v1623, %v1378
      %v1642 = vsel %vm1636, %v1624, %v1379
      %v1643 = vsel %vm1636, %v1625, %v1380
      %v1644 = vsel %vm1636, %v1626, %v1381
      %v1645 = vsel %vm1636, %v1627, %v1382
      %v1646 = vsel %vm1636, %v1628, %v1383
      %v1647 = vsel %vm1636, %v1629, %v1384
      %v1648 = vsel %vm1636, %v1630, %v1385
      %v1649 = vsel %vm1636, %v1631, %v1386
      %v1650 = vsel %vm1636, %v1632, %v1387
      %v1651 = vsel %vm1636, %v1633, %v1388
      %v1652 = vsel %vm1636, %v1634, %v1389
      %1653 = vst [vmem:[%s361] sm:$0xff] %v1637
      %1654 = vst [vmem:[%s361 + $0x8] sm:$0xff] %v1638
      %1655 = vst [vmem:[%s361 + $0x10] sm:$0xff] %v1639
      %1656 = vst [vmem:[%s361 + $0x18] sm:$0xff] %v1640
      %1657 = vst [vmem:[%s361 + $0x20] sm:$0xff] %v1641
      %1658 = vst [vmem:[%s361 + $0x28] sm:$0xff] %v1642
      %1659 = vst [vmem:[%s361 + $0x30] sm:$0xff] %v1643
      %1660 = vst [vmem:[%s361 + $0x38] sm:$0xff] %v1644
      %1661 = vst [vmem:[%s361 + $0x40] sm:$0xff] %v1645
      %1662 = vst [vmem:[%s361 + $0x48] sm:$0xff] %v1646
      %1663 = vst [vmem:[%s361 + $0x50] sm:$0xff] %v1647
      %1664 = vst [vmem:[%s361 + $0x58] sm:$0xff] %v1648
      %1665 = vst [vmem:[%s361 + $0x60] sm:$0xff] %v1649
      %1666 = vst [vmem:[%s361 + $0x68] sm:$0xff] %v1650
      %1667 = vst [vmem:[%s361 + $0x70] sm:$0xff] %v1651
      %1668 = vst [vmem:[%s361 + $0x78] sm:$0xff] %v1652
      %s1669 = smul.u32 16, %s21
      %p1670 = scmp.lt.s32.totalorder %s1669, 31
      %s1671 = scalar_select %p1670, %s1669, 31
      %s1672 = smul.addr %s1671, 8
      %s1673 = scalar_lea.vmem %s10, %s1672
      // Predicated region
      $region61: #{_lambda_.1} parent=59 // pred_check
        %p1674 = pneg %p254
      $region62: #{_lambda_.1} parent=59 // pred_check_branch
        %1676 = sbr.rel (%p1674) target = $region64
      $region63: #{_lambda_.1} parent=59 // pred_region
        %s1677 = smul.u32 16, %s21
      $region64: #{_lambda_.1} parent=59 // pred_fallthru
        _
    $region60: #{_lambda_.1} parent=5 // pred_fallthru
      _
    %p1678 = scmp.le.s32.totalorder 2, %s16
    // Predicated region
    $region65: #{_lambda_.1} parent=5 // pred_check
      %p1679 = pneg %p1678
    $region66: #{_lambda_.1} parent=5 // pred_check_branch
      %1681 = sbr.rel (%p1679) target = $region68
    $region67: #{_lambda_.1} parent=5 // pred_region
      %s1682 = ssub.s32 %s16, 2
      // Predicated region
      $region69: #{_lambda_.1} parent=67 // pred_check
        %p1683 = pneg %p260
      $region70: #{_lambda_.1} parent=67 // pred_check_branch
        %1685 = sbr.rel (%p1683) target = $region72
      $region71: #{_lambda_.1} parent=67 // pred_region
        %s1686 = smul.u32 16, %s22
        %p1687 = scmp.lt.s32.totalorder %s1686, 31
        %s1688 = scalar_select %p1687, %s1686, 31
        %s1689 = smul.addr %s1688, 8
        %s1690 = scalar_lea.vmem %s10, %s1689
      $region72: #{_lambda_.1} parent=67 // pred_fallthru
        _
    $region68: #{_lambda_.1} parent=5 // pred_fallthru
      _
  $region6: #{_lambda_.1} parent=0 // loop_footer
    %s20 = sadd.s32 1, %s16
  $region7: #{_lambda_.1} parent=0 // loop_footer_branch
    %15 = sbr.rel target = $region3
  $region8: #{_lambda_.1} parent=0 // loop_exit
    _

</llo_original>
